<compile_context>
chip_gen: v5e
topology: v5e:2x2
jax: 0.10.0
libtpu: 0.0.40
codegen_flags: <defaults>
</compile_context>

<pallas_src>
import jax
import jax.numpy as jnp
from jax.experimental import pallas as pl
from jax.experimental.pallas import tpu as pltpu


# ---------------------------------------------------------------------------
# Fused Pallas kernel: window attention + Y reweighting + MLP + combine
# ---------------------------------------------------------------------------
def _fused_attention_mlp_kernel(q_ref, k_ref, y_ref, ft_ref,
                                w1t_ref, b1_ref, w2_ref, b2_ref,
                                out_ref, score_sc):
    """One batch element per grid step.

    q_ref:   (1, nwin2, L, C)   bf16  query windows (tokens x channels)
    k_ref:   (1, nwin2, S, C)   bf16  demo windows  (J*L tokens x channels)
    y_ref:   (1, nwin2, 1, S)   f32   demo_Y windows
    ft_ref:  (1, C, T)          bf16  query features, token-in-lane layout
    w1t_ref: (fc, C)            bf16  fc1 weight (transposed)
    b1_ref:  (fc, 1)            f32
    w2_ref:  (fc, 1)            f32   fc2 weight column (out_dim == 1)
    b2_ref:  (1, 1)             f32
    out_ref: (1, 1, T)          f32   combined output row (lane-dense)
    score_sc:(1, T)             f32   VMEM scratch for the reweighted score row
    """
    _, nwin2, L, _ = q_ref.shape

    # ---- window cross-attention, all windows of this batch element ----
    for w in range(nwin2):                        # static unroll, nwin2 small
        q = q_ref[0, w]                           # (L, C)  bf16
        k = k_ref[0, w]                           # (S, C)  bf16
        s = jax.lax.dot_general(q, k, (((1,), (1,)), ((), ())),
                                preferred_element_type=jnp.float32)   # (L, S)
        m = jnp.max(s, axis=-1, keepdims=True)
        e = jnp.exp(s - m)                                            # f32, EUP
        denom = jnp.sum(e, axis=-1, keepdims=True)
        attn = e * pl.reciprocal(denom, approx=True)                  # (L, S)
        yv = y_ref[0, w]                                              # (1, S)
        # Reweighted output directly as a (1, L) row: contract S with demo_Y
        # on the left -- no (L, 1) output column, no in-kernel transpose.
        rew = jax.lax.dot_general(yv, attn, (((1,), (1,)), ((), ())),
                                  preferred_element_type=jnp.float32)  # (1, L)
        score_sc[:, w * L:(w + 1) * L] = rew

    # ---- pointwise projection MLP, tokens in the lane dim ----
    h = jnp.dot(w1t_ref[...], ft_ref[0],
                preferred_element_type=jnp.float32)          # (fc, T) f32
    h = jnp.tanh(h + b1_ref[...])                            # f32 elementwise
    # fc2 (fc_dim -> 1): VPU broadcast-multiply + sublane reduce instead of an
    # MXU matmul with a single output column.
    y_mlp = jnp.sum(h * w2_ref[...], axis=0, keepdims=True)  # (1, T)

    # ---- fused combine: (fc2(x) + score) / 2, single lane-dense store ----
    out_ref[0] = (y_mlp + b2_ref[...] + score_sc[...]) * 0.5


def _fused_forward(qw, dw, yw, featT, w1t, b1c, w2c, b2c):
    """qw:(B,nwin2,L,C) dw:(B,nwin2,S,C) yw:(B,nwin2,1,S) featT:(B,C,T)."""
    B, nwin2, L, C = qw.shape
    S = dw.shape[2]
    T = nwin2 * L
    fc = w1t.shape[0]
    return pl.pallas_call(
        _fused_attention_mlp_kernel,
        out_shape=jax.ShapeDtypeStruct((B, 1, T), jnp.float32),
        grid=(B,),
        in_specs=[
            pl.BlockSpec((1, nwin2, L, C), lambda b: (b, 0, 0, 0)),
            pl.BlockSpec((1, nwin2, S, C), lambda b: (b, 0, 0, 0)),
            pl.BlockSpec((1, nwin2, 1, S), lambda b: (b, 0, 0, 0)),
            pl.BlockSpec((1, C, T), lambda b: (b, 0, 0)),
            pl.BlockSpec((fc, C), lambda b: (0, 0)),
            pl.BlockSpec((fc, 1), lambda b: (0, 0)),
            pl.BlockSpec((fc, 1), lambda b: (0, 0)),
            pl.BlockSpec((1, 1), lambda b: (0, 0)),
        ],
        out_specs=pl.BlockSpec((1, 1, T), lambda b: (b, 0, 0)),
        scratch_shapes=[pltpu.VMEM((1, T), jnp.float32)],
        compiler_params=pltpu.CompilerParams(
            dimension_semantics=("parallel",)),
    )(qw, dw, yw, featT, w1t, b1c, w2c, b2c)


# ---------------------------------------------------------------------------
# Forward pass (window partition glue in plain JAX, compute in Pallas)
# ---------------------------------------------------------------------------
def fewshot_spatial_forward(x, w1, b1, w2, b2, *, C_fno, J, win_s):
    B, _, H, W = x.shape
    C = C_fno
    ws = win_s
    assert H % ws == 0 and W % ws == 0, "H, W must be divisible by win_s"
    nw = H // ws
    nwin2 = nw * nw
    ws2 = ws * ws
    T = nwin2 * ws2
    assert w2.shape[1] == 1, "combine with the 1-channel score implies out_dim==1"

    # Split packed input (matches torch slicing on channel axis).
    query_x = x[:, :C]                       # (B, C, H, W)
    demo_X = x[:, C:(J + 1) * C]             # (B, J*C, H, W)
    demo_Y = x[:, (J + 1) * C:]              # (B, J, H, W)

    # skip_backbone=True: features are the raw channels; down=1 bilinear
    # interpolation (align_corners=True) is the identity.
    q6 = query_x.reshape(B, C, nw, ws, nw, ws)          # (B,C,wi,p,wj,q)
    # query windows, token-major: (B, nwin2, ws2, C)
    qw = q6.transpose(0, 2, 4, 3, 5, 1).reshape(B, nwin2, ws2, C)
    # same features, token-in-lane layout for the MLP: (B, C, T)
    featT = q6.transpose(0, 1, 2, 4, 3, 5).reshape(B, C, T)

    d7 = demo_X.reshape(B, J, C, nw, ws, nw, ws)        # (B,j,C,wi,p,wj,q)
    dw = d7.transpose(0, 3, 5, 1, 4, 6, 2).reshape(B, nwin2, J * ws2, C)

    y6 = demo_Y.reshape(B, J, nw, ws, nw, ws)           # (B,j,wi,p,wj,q)
    yw = y6.transpose(0, 2, 4, 1, 3, 5).reshape(B, nwin2, 1, J * ws2)

    # bf16 MXU operands (accumulation stays f32 inside the kernel).
    qw = qw.astype(jnp.bfloat16)
    dw = dw.astype(jnp.bfloat16)
    featT = featT.astype(jnp.bfloat16)
    w1t = w1.T.astype(jnp.bfloat16)                     # (fc, C)
    b1c = b1.reshape(-1, 1).astype(jnp.float32)         # (fc, 1)
    w2c = w2.reshape(-1, 1).astype(jnp.float32)         # (fc, 1)
    b2c = b2.reshape(1, 1).astype(jnp.float32)          # (1, 1)

    out_row = _fused_forward(qw, dw, yw.astype(jnp.float32), featT,
                             w1t, b1c, w2c, b2c)        # (B, 1, T)

    # window_reverse on the already-combined output (tiny, layout-only).
    y = out_row.reshape(B, 1, nw, nw, ws, ws)
    y = y.transpose(0, 1, 2, 4, 3, 5).reshape(B, 1, H, W)
    return y


# ---------------------------------------------------------------------------
# Pure-JAX f32 reference (for verification only)
# ---------------------------------------------------------------------------
def reference_forward(x, w1, b1, w2, b2, *, C_fno, J, win_s):
    hp = jax.lax.Precision.HIGHEST
    B, _, H, W = x.shape
    C = C_fno
    ws = win_s
    nw = H // ws
    nwin2 = nw * nw
    ws2 = ws * ws

    query_x = x[:, :C]
    demo_X = x[:, C:(J + 1) * C]
    demo_Y = x[:, (J + 1) * C:]
    demo_features = demo_X.reshape(B, J, C, H, W)

    qw = query_x.reshape(B, C, nw, ws, nw, ws)
    qw = qw.transpose(0, 2, 4, 1, 3, 5).reshape(B, nwin2, C, ws, ws)
    qw = qw.transpose(0, 1, 3, 4, 2).reshape(B * nwin2, ws2, C)

    dw = demo_features.reshape(B, J, C, nw, ws, nw, ws)
    dw = dw.transpose(0, 1, 3, 5, 2, 4, 6).reshape(B, J, nwin2, C, ws, ws)
    dw = dw.transpose(0, 2, 1, 4, 5, 3).reshape(B * nwin2, J * ws2, C)

    yw = demo_Y.reshape(B, J, 1, nw, ws, nw, ws)
    yw = yw.transpose(0, 1, 3, 5, 2, 4, 6).reshape(B, J, nwin2, 1, ws, ws)
    yw = yw[:, :, :, 0].transpose(0, 2, 1, 3, 4).reshape(B * nwin2, J * ws2)

    attn = jnp.einsum('blc,bsc->bls', qw, dw, precision=hp)
    attn = jax.nn.softmax(attn, axis=-1)
    rew = jnp.einsum('bls,bs->bl', attn, yw, precision=hp)
    rew = rew.reshape(B, nw, nw, 1, ws, ws)
    score = rew.transpose(0, 3, 1, 4, 2, 5).reshape(B, 1, H, W)

    feat = query_x.transpose(0, 2, 3, 1)                       # (B, H, W, C)
    h = jnp.tanh(jnp.einsum('bhwc,cf->bhwf', feat, w1, precision=hp) + b1)
    y = jnp.einsum('bhwf,fo->bhwo', h, w2, precision=hp) + b2
    y = y.transpose(0, 3, 1, 2)
    return (y + score) / 2


# ---------------------------------------------------------------------------
if __name__ == "__main__":
    B, C_fno, J, H, W = 2, 32, 3, 16, 16
    win_s, fc_dim, out_dim = 8, 64, 1

    key = jax.random.PRNGKey(0)
    kx, k1, k2, k3, k4 = jax.random.split(key, 5)

    n_chan = J * C_fno + J + C_fno                 # J*c + J*1 + c
    x = jax.random.normal(kx, (B, n_chan, H, W), dtype=jnp.float32)

    # Deterministic parameter init (fc1: C_fno->fc_dim, fc2: fc_dim->out_dim).
    w1 = jax.random.normal(k1, (C_fno, fc_dim), jnp.float32) / jnp.sqrt(C_fno)
    b1 = jax.random.normal(k2, (fc_dim,), jnp.float32) * 0.01
    w2 = jax.random.normal(k3, (fc_dim, out_dim), jnp.float32) / jnp.sqrt(fc_dim)
    b2 = jax.random.normal(k4, (out_dim,), jnp.float32) * 0.01

    y = fewshot_spatial_forward(x, w1, b1, w2, b2,
                                C_fno=C_fno, J=J, win_s=win_s)
    y = jax.block_until_ready(y)
    assert y.shape == (B, out_dim, H, W), y.shape

    y_ref = reference_forward(x, w1, b1, w2, b2,
                              C_fno=C_fno, J=J, win_s=win_s)
    # Tolerance covers the bf16 MXU operands + approx reciprocal used per the
    # performance review (reference is full-f32 HIGHEST precision).
    max_err = float(jnp.max(jnp.abs(y - y_ref)))
    assert max_err < 5e-2, f"max abs error too large: {max_err}"

    print("KERNEL_OK")
</pallas_src>

<mosaic_0001>
module attributes {stable_mosaic.version = 11 : i64} {
  func.func @_fused_attention_mlp_kernel(%arg0: i32, %arg1: memref<1x4x64x32xbf16, #tpu.memory_space<vmem>>, %arg2: memref<1x4x192x32xbf16, #tpu.memory_space<vmem>>, %arg3: memref<1x4x1x192xf32, #tpu.memory_space<vmem>>, %arg4: memref<1x32x256xbf16, #tpu.memory_space<vmem>>, %arg5: memref<64x32xbf16, #tpu.memory_space<vmem>>, %arg6: memref<64x1xf32, #tpu.memory_space<vmem>>, %arg7: memref<64x1xf32, #tpu.memory_space<vmem>>, %arg8: memref<1x1xf32, #tpu.memory_space<vmem>>, %arg9: memref<1x1x256xf32, #tpu.memory_space<vmem>>, %arg10: memref<1x256xf32, #tpu.memory_space<vmem>>) attributes {dimension_semantics = [#tpu.dimension_semantics<parallel>], iteration_bounds = array<i64: 2>, scalar_prefetch = 0 : i64, scratch_operands = 1 : i64, tpu.core_type = #tpu.core_type<tc>, window_params = [{transform_indices = @transform_0, window_bounds = array<i64: 1, 4, 64, 32>}, {transform_indices = @transform_1, window_bounds = array<i64: 1, 4, 192, 32>}, {transform_indices = @transform_2, window_bounds = array<i64: 1, 4, 1, 192>}, {transform_indices = @transform_3, window_bounds = array<i64: 1, 32, 256>}, {pipeline_mode = #tpu.pipeline_mode<synchronous>, transform_indices = @transform_4, window_bounds = array<i64: 64, 32>}, {pipeline_mode = #tpu.pipeline_mode<synchronous>, transform_indices = @transform_5, window_bounds = array<i64: 64, 1>}, {pipeline_mode = #tpu.pipeline_mode<synchronous>, transform_indices = @transform_6, window_bounds = array<i64: 64, 1>}, {pipeline_mode = #tpu.pipeline_mode<synchronous>, transform_indices = @transform_7, window_bounds = array<i64: 1, 1>}, {transform_indices = @transform_8, window_bounds = array<i64: 1, 1, 256>}]} {
    %c0 = arith.constant 0 : index
    %c0_0 = arith.constant 0 : index
    %c0_1 = arith.constant 0 : index
    %c0_2 = arith.constant 0 : index
    %0 = vector.load %arg1[%c0, %c0_0, %c0_1, %c0_2] : memref<1x4x64x32xbf16, #tpu.memory_space<vmem>>, vector<1x1x64x32xbf16>
    %1 = vector.shape_cast %0 : vector<1x1x64x32xbf16> to vector<64x32xbf16>
    %c0_3 = arith.constant 0 : index
    %c0_4 = arith.constant 0 : index
    %c0_5 = arith.constant 0 : index
    %c0_6 = arith.constant 0 : index
    %2 = vector.load %arg2[%c0_3, %c0_4, %c0_5, %c0_6] : memref<1x4x192x32xbf16, #tpu.memory_space<vmem>>, vector<1x1x192x32xbf16>
    %3 = vector.shape_cast %2 : vector<1x1x192x32xbf16> to vector<192x32xbf16>
    %cst = arith.constant dense<0.000000e+00> : vector<64x192xf32>
    %4 = tpu.matmul %1, %3, %cst {dimension_numbers = #tpu.dot_dimension_numbers<[1], [1], [0], [0], [0, 0, 1, 0], [], []>} : vector<64x32xbf16>, vector<192x32xbf16>, vector<64x192xf32> -> vector<64x192xf32>
    %cst_7 = arith.constant dense<0xFF800000> : vector<64xf32>
    %5 = vector.multi_reduction <maximumf>, %4, %cst_7 [1] : vector<64x192xf32> to vector<64xf32>
    %6 = vector.shape_cast %5 : vector<64xf32> to vector<64x1xf32>
    %7 = vector.broadcast %6 : vector<64x1xf32> to vector<64x192xf32>
    %8 = arith.subf %4, %7 : vector<64x192xf32>
    %9 = math.exp %8 : vector<64x192xf32>
    %cst_8 = arith.constant dense<0.000000e+00> : vector<64xf32>
    %10 = vector.multi_reduction <add>, %9, %cst_8 [1] : vector<64x192xf32> to vector<64xf32>
    %11 = vector.shape_cast %10 : vector<64xf32> to vector<64x1xf32>
    %12 = tpu.reciprocal %11 {approx = true} : vector<64x1xf32> -> vector<64x1xf32>
    %13 = vector.broadcast %12 : vector<64x1xf32> to vector<64x192xf32>
    %14 = arith.mulf %9, %13 : vector<64x192xf32>
    %c0_9 = arith.constant 0 : index
    %c0_10 = arith.constant 0 : index
    %c0_11 = arith.constant 0 : index
    %c0_12 = arith.constant 0 : index
    %15 = vector.load %arg3[%c0_9, %c0_10, %c0_11, %c0_12] : memref<1x4x1x192xf32, #tpu.memory_space<vmem>>, vector<1x1x1x192xf32>
    %16 = vector.shape_cast %15 : vector<1x1x1x192xf32> to vector<1x192xf32>
    %cst_13 = arith.constant dense<0.000000e+00> : vector<1x64xf32>
    %17 = tpu.matmul %16, %14, %cst_13 {dimension_numbers = #tpu.dot_dimension_numbers<[1], [1], [0], [0], [0, 0, 1, 0], [], []>} : vector<1x192xf32>, vector<64x192xf32>, vector<1x64xf32> -> vector<1x64xf32>
    %c0_14 = arith.constant 0 : index
    %c0_15 = arith.constant 0 : index
    %18 = vector.load %arg10[%c0_14, %c0_15] : memref<1x256xf32, #tpu.memory_space<vmem>>, vector<1x64xf32>
    tpu.vector_store %arg10[%c0_14, %c0_15], %17 {strides = array<i32>} : memref<1x256xf32, #tpu.memory_space<vmem>>, vector<1x64xf32>,
    %c0_16 = arith.constant 0 : index
    %c1 = arith.constant 1 : index
    %c0_17 = arith.constant 0 : index
    %c0_18 = arith.constant 0 : index
    %19 = vector.load %arg1[%c0_16, %c1, %c0_17, %c0_18] : memref<1x4x64x32xbf16, #tpu.memory_space<vmem>>, vector<1x1x64x32xbf16>
    %20 = vector.shape_cast %19 : vector<1x1x64x32xbf16> to vector<64x32xbf16>
    %c0_19 = arith.constant 0 : index
    %c1_20 = arith.constant 1 : index
    %c0_21 = arith.constant 0 : index
    %c0_22 = arith.constant 0 : index
    %21 = vector.load %arg2[%c0_19, %c1_20, %c0_21, %c0_22] : memref<1x4x192x32xbf16, #tpu.memory_space<vmem>>, vector<1x1x192x32xbf16>
    %22 = vector.shape_cast %21 : vector<1x1x192x32xbf16> to vector<192x32xbf16>
    %cst_23 = arith.constant dense<0.000000e+00> : vector<64x192xf32>
    %23 = tpu.matmul %20, %22, %cst_23 {dimension_numbers = #tpu.dot_dimension_numbers<[1], [1], [0], [0], [0, 0, 1, 0], [], []>} : vector<64x32xbf16>, vector<192x32xbf16>, vector<64x192xf32> -> vector<64x192xf32>
    %cst_24 = arith.constant dense<0xFF800000> : vector<64xf32>
    %24 = vector.multi_reduction <maximumf>, %23, %cst_24 [1] : vector<64x192xf32> to vector<64xf32>
    %25 = vector.shape_cast %24 : vector<64xf32> to vector<64x1xf32>
    %26 = vector.broadcast %25 : vector<64x1xf32> to vector<64x192xf32>
    %27 = arith.subf %23, %26 : vector<64x192xf32>
    %28 = math.exp %27 : vector<64x192xf32>
    %cst_25 = arith.constant dense<0.000000e+00> : vector<64xf32>
    %29 = vector.multi_reduction <add>, %28, %cst_25 [1] : vector<64x192xf32> to vector<64xf32>
    %30 = vector.shape_cast %29 : vector<64xf32> to vector<64x1xf32>
    %31 = tpu.reciprocal %30 {approx = true} : vector<64x1xf32> -> vector<64x1xf32>
    %32 = vector.broadcast %31 : vector<64x1xf32> to vector<64x192xf32>
    %33 = arith.mulf %28, %32 : vector<64x192xf32>
    %c0_26 = arith.constant 0 : index
    %c1_27 = arith.constant 1 : index
    %c0_28 = arith.constant 0 : index
    %c0_29 = arith.constant 0 : index
    %34 = vector.load %arg3[%c0_26, %c1_27, %c0_28, %c0_29] : memref<1x4x1x192xf32, #tpu.memory_space<vmem>>, vector<1x1x1x192xf32>
    %35 = vector.shape_cast %34 : vector<1x1x1x192xf32> to vector<1x192xf32>
    %cst_30 = arith.constant dense<0.000000e+00> : vector<1x64xf32>
    %36 = tpu.matmul %35, %33, %cst_30 {dimension_numbers = #tpu.dot_dimension_numbers<[1], [1], [0], [0], [0, 0, 1, 0], [], []>} : vector<1x192xf32>, vector<64x192xf32>, vector<1x64xf32> -> vector<1x64xf32>
    %c0_31 = arith.constant 0 : index
    %c64 = arith.constant 64 : index
    %37 = vector.load %arg10[%c0_31, %c64] : memref<1x256xf32, #tpu.memory_space<vmem>>, vector<1x64xf32>
    tpu.vector_store %arg10[%c0_31, %c64], %36 {strides = array<i32>} : memref<1x256xf32, #tpu.memory_space<vmem>>, vector<1x64xf32>,
    %c0_32 = arith.constant 0 : index
    %c2 = arith.constant 2 : index
    %c0_33 = arith.constant 0 : index
    %c0_34 = arith.constant 0 : index
    %38 = vector.load %arg1[%c0_32, %c2, %c0_33, %c0_34] : memref<1x4x64x32xbf16, #tpu.memory_space<vmem>>, vector<1x1x64x32xbf16>
    %39 = vector.shape_cast %38 : vector<1x1x64x32xbf16> to vector<64x32xbf16>
    %c0_35 = arith.constant 0 : index
    %c2_36 = arith.constant 2 : index
    %c0_37 = arith.constant 0 : index
    %c0_38 = arith.constant 0 : index
    %40 = vector.load %arg2[%c0_35, %c2_36, %c0_37, %c0_38] : memref<1x4x192x32xbf16, #tpu.memory_space<vmem>>, vector<1x1x192x32xbf16>
    %41 = vector.shape_cast %40 : vector<1x1x192x32xbf16> to vector<192x32xbf16>
    %cst_39 = arith.constant dense<0.000000e+00> : vector<64x192xf32>
    %42 = tpu.matmul %39, %41, %cst_39 {dimension_numbers = #tpu.dot_dimension_numbers<[1], [1], [0], [0], [0, 0, 1, 0], [], []>} : vector<64x32xbf16>, vector<192x32xbf16>, vector<64x192xf32> -> vector<64x192xf32>
    %cst_40 = arith.constant dense<0xFF800000> : vector<64xf32>
    %43 = vector.multi_reduction <maximumf>, %42, %cst_40 [1] : vector<64x192xf32> to vector<64xf32>
    %44 = vector.shape_cast %43 : vector<64xf32> to vector<64x1xf32>
    %45 = vector.broadcast %44 : vector<64x1xf32> to vector<64x192xf32>
    %46 = arith.subf %42, %45 : vector<64x192xf32>
    %47 = math.exp %46 : vector<64x192xf32>
    %cst_41 = arith.constant dense<0.000000e+00> : vector<64xf32>
    %48 = vector.multi_reduction <add>, %47, %cst_41 [1] : vector<64x192xf32> to vector<64xf32>
    %49 = vector.shape_cast %48 : vector<64xf32> to vector<64x1xf32>
    %50 = tpu.reciprocal %49 {approx = true} : vector<64x1xf32> -> vector<64x1xf32>
    %51 = vector.broadcast %50 : vector<64x1xf32> to vector<64x192xf32>
    %52 = arith.mulf %47, %51 : vector<64x192xf32>
    %c0_42 = arith.constant 0 : index
    %c2_43 = arith.constant 2 : index
    %c0_44 = arith.constant 0 : index
    %c0_45 = arith.constant 0 : index
    %53 = vector.load %arg3[%c0_42, %c2_43, %c0_44, %c0_45] : memref<1x4x1x192xf32, #tpu.memory_space<vmem>>, vector<1x1x1x192xf32>
    %54 = vector.shape_cast %53 : vector<1x1x1x192xf32> to vector<1x192xf32>
    %cst_46 = arith.constant dense<0.000000e+00> : vector<1x64xf32>
    %55 = tpu.matmul %54, %52, %cst_46 {dimension_numbers = #tpu.dot_dimension_numbers<[1], [1], [0], [0], [0, 0, 1, 0], [], []>} : vector<1x192xf32>, vector<64x192xf32>, vector<1x64xf32> -> vector<1x64xf32>
    %c0_47 = arith.constant 0 : index
    %c128 = arith.constant 128 : index
    %56 = vector.load %arg10[%c0_47, %c128] : memref<1x256xf32, #tpu.memory_space<vmem>>, vector<1x64xf32>
    tpu.vector_store %arg10[%c0_47, %c128], %55 {strides = array<i32>} : memref<1x256xf32, #tpu.memory_space<vmem>>, vector<1x64xf32>,
    %c0_48 = arith.constant 0 : index
    %c3 = arith.constant 3 : index
    %c0_49 = arith.constant 0 : index
    %c0_50 = arith.constant 0 : index
    %57 = vector.load %arg1[%c0_48, %c3, %c0_49, %c0_50] : memref<1x4x64x32xbf16, #tpu.memory_space<vmem>>, vector<1x1x64x32xbf16>
    %58 = vector.shape_cast %57 : vector<1x1x64x32xbf16> to vector<64x32xbf16>
    %c0_51 = arith.constant 0 : index
    %c3_52 = arith.constant 3 : index
    %c0_53 = arith.constant 0 : index
    %c0_54 = arith.constant 0 : index
    %59 = vector.load %arg2[%c0_51, %c3_52, %c0_53, %c0_54] : memref<1x4x192x32xbf16, #tpu.memory_space<vmem>>, vector<1x1x192x32xbf16>
    %60 = vector.shape_cast %59 : vector<1x1x192x32xbf16> to vector<192x32xbf16>
    %cst_55 = arith.constant dense<0.000000e+00> : vector<64x192xf32>
    %61 = tpu.matmul %58, %60, %cst_55 {dimension_numbers = #tpu.dot_dimension_numbers<[1], [1], [0], [0], [0, 0, 1, 0], [], []>} : vector<64x32xbf16>, vector<192x32xbf16>, vector<64x192xf32> -> vector<64x192xf32>
    %cst_56 = arith.constant dense<0xFF800000> : vector<64xf32>
    %62 = vector.multi_reduction <maximumf>, %61, %cst_56 [1] : vector<64x192xf32> to vector<64xf32>
    %63 = vector.shape_cast %62 : vector<64xf32> to vector<64x1xf32>
    %64 = vector.broadcast %63 : vector<64x1xf32> to vector<64x192xf32>
    %65 = arith.subf %61, %64 : vector<64x192xf32>
    %66 = math.exp %65 : vector<64x192xf32>
    %cst_57 = arith.constant dense<0.000000e+00> : vector<64xf32>
    %67 = vector.multi_reduction <add>, %66, %cst_57 [1] : vector<64x192xf32> to vector<64xf32>
    %68 = vector.shape_cast %67 : vector<64xf32> to vector<64x1xf32>
    %69 = tpu.reciprocal %68 {approx = true} : vector<64x1xf32> -> vector<64x1xf32>
    %70 = vector.broadcast %69 : vector<64x1xf32> to vector<64x192xf32>
    %71 = arith.mulf %66, %70 : vector<64x192xf32>
    %c0_58 = arith.constant 0 : index
    %c3_59 = arith.constant 3 : index
    %c0_60 = arith.constant 0 : index
    %c0_61 = arith.constant 0 : index
    %72 = vector.load %arg3[%c0_58, %c3_59, %c0_60, %c0_61] : memref<1x4x1x192xf32, #tpu.memory_space<vmem>>, vector<1x1x1x192xf32>
    %73 = vector.shape_cast %72 : vector<1x1x1x192xf32> to vector<1x192xf32>
    %cst_62 = arith.constant dense<0.000000e+00> : vector<1x64xf32>
    %74 = tpu.matmul %73, %71, %cst_62 {dimension_numbers = #tpu.dot_dimension_numbers<[1], [1], [0], [0], [0, 0, 1, 0], [], []>} : vector<1x192xf32>, vector<64x192xf32>, vector<1x64xf32> -> vector<1x64xf32>
    %c0_63 = arith.constant 0 : index
    %c192 = arith.constant 192 : index
    %75 = vector.load %arg10[%c0_63, %c192] : memref<1x256xf32, #tpu.memory_space<vmem>>, vector<1x64xf32>
    tpu.vector_store %arg10[%c0_63, %c192], %74 {strides = array<i32>} : memref<1x256xf32, #tpu.memory_space<vmem>>, vector<1x64xf32>,
    %c0_64 = arith.constant 0 : index
    %c0_65 = arith.constant 0 : index
    %76 = vector.load %arg5[%c0_64, %c0_65] : memref<64x32xbf16, #tpu.memory_space<vmem>>, vector<64x32xbf16>
    %c0_66 = arith.constant 0 : index
    %c0_67 = arith.constant 0 : index
    %c0_68 = arith.constant 0 : index
    %77 = vector.load %arg4[%c0_66, %c0_67, %c0_68] : memref<1x32x256xbf16, #tpu.memory_space<vmem>>, vector<1x32x256xbf16>
    %78 = vector.shape_cast %77 : vector<1x32x256xbf16> to vector<32x256xbf16>
    %cst_69 = arith.constant dense<0.000000e+00> : vector<64x256xf32>
    %79 = tpu.matmul %76, %78, %cst_69 {dimension_numbers = #tpu.dot_dimension_numbers<[1], [0], [0], [1], [0, 0, 1, 1], [], []>} : vector<64x32xbf16>, vector<32x256xbf16>, vector<64x256xf32> -> vector<64x256xf32>
    %c0_70 = arith.constant 0 : index
    %c0_71 = arith.constant 0 : index
    %80 = vector.load %arg6[%c0_70, %c0_71] : memref<64x1xf32, #tpu.memory_space<vmem>>, vector<64x1xf32>
    %81 = vector.broadcast %80 : vector<64x1xf32> to vector<64x256xf32>
    %82 = arith.addf %79, %81 : vector<64x256xf32>
    %83 = math.tanh %82 : vector<64x256xf32>
    %c0_72 = arith.constant 0 : index
    %c0_73 = arith.constant 0 : index
    %84 = vector.load %arg7[%c0_72, %c0_73] : memref<64x1xf32, #tpu.memory_space<vmem>>, vector<64x1xf32>
    %85 = vector.broadcast %84 : vector<64x1xf32> to vector<64x256xf32>
    %86 = arith.mulf %83, %85 : vector<64x256xf32>
    %cst_74 = arith.constant dense<0.000000e+00> : vector<256xf32>
    %87 = vector.multi_reduction <add>, %86, %cst_74 [0] : vector<64x256xf32> to vector<256xf32>
    %88 = vector.shape_cast %87 : vector<256xf32> to vector<1x256xf32>
    %c0_75 = arith.constant 0 : index
    %c0_76 = arith.constant 0 : index
    %89 = vector.load %arg8[%c0_75, %c0_76] : memref<1x1xf32, #tpu.memory_space<vmem>>, vector<1x1xf32>
    %90 = vector.broadcast %89 : vector<1x1xf32> to vector<1x256xf32>
    %91 = arith.addf %88, %90 : vector<1x256xf32>
    %c0_77 = arith.constant 0 : index
    %c0_78 = arith.constant 0 : index
    %92 = vector.load %arg10[%c0_77, %c0_78] : memref<1x256xf32, #tpu.memory_space<vmem>>, vector<1x256xf32>
    %93 = arith.addf %91, %92 : vector<1x256xf32>
    %cst_79 = arith.constant 5.000000e-01 : f32
    %94 = vector.broadcast %cst_79 : f32 to vector<1x256xf32>
    %95 = arith.mulf %93, %94 : vector<1x256xf32>
    %c0_80 = arith.constant 0 : index
    %c0_81 = arith.constant 0 : index
    %c0_82 = arith.constant 0 : index
    %96 = vector.load %arg9[%c0_80, %c0_81, %c0_82] : memref<1x1x256xf32, #tpu.memory_space<vmem>>, vector<1x1x256xf32>
    %97 = vector.shape_cast %96 : vector<1x1x256xf32> to vector<1x256xf32>
    %98 = vector.shape_cast %95 : vector<1x256xf32> to vector<1x1x256xf32>
    tpu.vector_store %arg9[%c0_80, %c0_81, %c0_82], %98 {strides = array<i32>} : memref<1x1x256xf32, #tpu.memory_space<vmem>>, vector<1x1x256xf32>,
    return
  }
  func.func @transform_0(%arg0: i32) -> (i32, i32, i32, i32) {
    %c0_i32 = arith.constant 0 : i32
    %c0_i32_0 = arith.constant 0 : i32
    %c0_i32_1 = arith.constant 0 : i32
    %c0_i32_2 = arith.constant 0 : i32
    return %arg0, %c0_i32, %c0_i32_0, %c0_i32_1 : i32, i32, i32, i32
  }
  func.func @transform_1(%arg0: i32) -> (i32, i32, i32, i32) {
    %c0_i32 = arith.constant 0 : i32
    %c0_i32_0 = arith.constant 0 : i32
    %c0_i32_1 = arith.constant 0 : i32
    %c0_i32_2 = arith.constant 0 : i32
    return %arg0, %c0_i32, %c0_i32_0, %c0_i32_1 : i32, i32, i32, i32
  }
  func.func @transform_2(%arg0: i32) -> (i32, i32, i32, i32) {
    %c0_i32 = arith.constant 0 : i32
    %c0_i32_0 = arith.constant 0 : i32
    %c0_i32_1 = arith.constant 0 : i32
    %c0_i32_2 = arith.constant 0 : i32
    return %arg0, %c0_i32, %c0_i32_0, %c0_i32_1 : i32, i32, i32, i32
  }
  func.func @transform_3(%arg0: i32) -> (i32, i32, i32) {
    %c0_i32 = arith.constant 0 : i32
    %c0_i32_0 = arith.constant 0 : i32
    %c0_i32_1 = arith.constant 0 : i32
    return %arg0, %c0_i32, %c0_i32_0 : i32, i32, i32
  }
  func.func @transform_4(%arg0: i32) -> (i32, i32) {
    %c0_i32 = arith.constant 0 : i32
    %c0_i32_0 = arith.constant 0 : i32
    %c0_i32_1 = arith.constant 0 : i32
    return %c0_i32, %c0_i32_0 : i32, i32
  }
  func.func @transform_5(%arg0: i32) -> (i32, i32) {
    %c0_i32 = arith.constant 0 : i32
    %c0_i32_0 = arith.constant 0 : i32
    %c0_i32_1 = arith.constant 0 : i32
    return %c0_i32, %c0_i32_0 : i32, i32
  }
  func.func @transform_6(%arg0: i32) -> (i32, i32) {
    %c0_i32 = arith.constant 0 : i32
    %c0_i32_0 = arith.constant 0 : i32
    %c0_i32_1 = arith.constant 0 : i32
    return %c0_i32, %c0_i32_0 : i32, i32
  }
  func.func @transform_7(%arg0: i32) -> (i32, i32) {
    %c0_i32 = arith.constant 0 : i32
    %c0_i32_0 = arith.constant 0 : i32
    %c0_i32_1 = arith.constant 0 : i32
    return %c0_i32, %c0_i32_0 : i32, i32
  }
  func.func @transform_8(%arg0: i32) -> (i32, i32, i32) {
    %c0_i32 = arith.constant 0 : i32
    %c0_i32_0 = arith.constant 0 : i32
    %c0_i32_1 = arith.constant 0 : i32
    return %arg0, %c0_i32, %c0_i32_0 : i32, i32, i32
  }
}

</mosaic_0001>

<llo_original>
// kernel: tpu_custom_call.1
$region0: #{tpu_custom_call.1}
  #allocation0 [shape = 'u32[]', space=smem, size = 0x4, offset = 0x4, fixed_abs, tag = 'smem constant byte address 0x4 - core index']
  #allocation1 [shape = 'u32[72,128]{1,0:T(1,128)}', space=vmem, size = 0x9000, scoped, tag = 'internal scratch']
  #allocation2 [shape = 'f32[1,256]{1,0:T(1,128)}', space=vmem, size = 0x400, scoped, tag = 'scratch operand']
  #allocation3 [shape = 'f32[1,1]{1,0:T(1,128)S(1)}', space=vmem, size = 0x200, scoped, tag = 'scoped memory for tpu_custom_call.1']
  %s0 = inlined_call_operand.vmem [shape: bf16[2,4,64,32], index: 0, kind: input, shape index: {}]
  %s1 = inlined_call_operand.vmem [shape: bf16[2,4,192,32], index: 1, kind: input, shape index: {}]
  %s2 = inlined_call_operand.vmem [shape: f32[2,4,1,192], index: 2, kind: input, shape index: {}]
  %s3 = inlined_call_operand.vmem [shape: bf16[2,32,256], index: 3, kind: input, shape index: {}]
  %s4 = inlined_call_operand.vmem [shape: bf16[64,32], index: 4, kind: input, shape index: {}]
  %s5 = inlined_call_operand.vmem [shape: f32[64,1], index: 5, kind: input, shape index: {}]
  %s6 = inlined_call_operand.vmem [shape: f32[64,1], index: 6, kind: input, shape index: {}]
  %s7 = inlined_call_operand.<no memory space> [shape: f32[1,1], index: 7, kind: input, shape index: {}]
  %s8 = inlined_call_operand.hbm [shape: f32[2,1,256], index: 8, kind: output, shape index: {}]
  %s9 = sld [smem:[#allocation0]]
  $region65: #{tpu_custom_call.1} parent=0
    _
  %s11 = ssub.s32 1, %s9
  %s12 = scalar_select 0, %s11, %s9
  %v13 = vstv %s7
  %14 = vst [vmem:[#allocation3] sm:$0x1] %v13
  $region1: #{tpu_custom_call.1} parent=0
    #allocation4 [shape = 'u8[2048]{0}', space=vmem, size = 0x800, scoped, tag = 'output window, operand 0']
    #allocation5 [shape = 's32[2]{0}', space=sflag, size = 0x8, scoped, tag = 'scoped memory for tpu_custom_call.1']
    %15 = vsyncpa [#allocation5], 0
    %s16 = scalar_lea.sflag [#allocation5], 1
    %17 = vsyncpa %s16, 0
    loop: start=0, step=1, limit=4
    $region2: #{tpu_custom_call.1} parent=1 // loop_pre_header
      _
    $region3: #{tpu_custom_call.1} parent=1 // loop_header
      %s19 = sphi 0, %s23
      %p20 = scmp.ge.s32.totalorder %s19, 4
      %s29 = sphi 0, %s31
      %s32 = sphi 0, %s29
      %s33 = sphi 0, %s32
      %s49 = sphi 0, %s33
      %s55 = sphi 0, %s57
      %s58 = sphi 0, %s55
      %s59 = sphi 0, %s58
      %s75 = sphi 0, %s59
      %s81 = sphi 0, %s83
      %s84 = sphi 0, %s81
      %s85 = sphi 0, %s84
      %s101 = sphi 0, %s85
      %s107 = sphi 0, %s109
      %s110 = sphi 0, %s107
      %s111 = sphi 0, %s110
      %s127 = sphi 0, %s111
      %s131 = sphi 0, %s131
      %s133 = sphi 0, %s131
      %s134 = sphi 0, %s133
      %s148 = sphi 0, %s134
      %s152 = sphi 0, %s152
      %s154 = sphi 0, %s152
      %s155 = sphi 0, %s154
      %s169 = sphi 0, %s155
      %s173 = sphi 0, %s173
      %s175 = sphi 0, %s173
      %s176 = sphi 0, %s175
      %s190 = sphi 0, %s176
      %s194 = sphi 0, %s194
      %s196 = sphi 0, %s194
      %s197 = sphi 0, %s196
      %s211 = sphi 0, %s197
      %s217 = sphi 0, %s219
      %s220 = sphi 0, %s217
      %s221 = sphi 0, %s220
      %s237 = sphi 0, %s221
    $region4: #{tpu_custom_call.1} parent=1 // loop_header_branch
      %22 = sbr.rel (%p20) target = $region8
    $region5: #{tpu_custom_call.1} parent=1 // loop_body
      %s24 = ssub.s32 %s19, 1
      %s25 = ssub.s32 %s19, 2
      %s26 = sadd.s32 %s19, 1
      %s27 = ssub.s32 %s19, %s26
      %p28 = scmp.eq.s32.totalorder %s27, 0
      %s30 = sadd.s32 %s29, 1
      %s31 = scalar_select %p28, %s29, %s30
      %p34 = pneg %p28
      %p35 = scmp.eq.s32.totalorder %s19, 1
      %p36 = por %p34, %p35
      %p37 = scmp.ne.s32.totalorder %s29, %s32
      %p38 = scmp.eq.s32.totalorder %s19, 0
      %p39 = por %p37, %p38
      %p40 = scmp.ne.s32.totalorder %s29, %s32
      %p41 = scmp.eq.s32.totalorder %s24, 1
      %p42 = por %p40, %p41
      %p43 = scmp.ne.s32.totalorder %s32, %s33
      %p44 = scmp.eq.s32.totalorder %s24, 0
      %p45 = por %p43, %p44
      %p46 = scmp.ne.s32.totalorder %s32, %s33
      %p47 = scmp.eq.s32.totalorder %s25, 1
      %p48 = por %p46, %p47
      %p50 = scmp.ne.s32.totalorder %s33, %s49
      %p51 = scmp.eq.s32.totalorder %s25, 0
      %p52 = por %p50, %p51
      %s53 = ssub.s32 %s19, %s26
      %p54 = scmp.eq.s32.totalorder %s53, 0
      %s56 = sadd.s32 %s55, 1
      %s57 = scalar_select %p54, %s55, %s56
      %p60 = pneg %p54
      %p61 = scmp.eq.s32.totalorder %s19, 1
      %p62 = por %p60, %p61
      %p63 = scmp.ne.s32.totalorder %s55, %s58
      %p64 = scmp.eq.s32.totalorder %s19, 0
      %p65 = por %p63, %p64
      %p66 = scmp.ne.s32.totalorder %s55, %s58
      %p67 = scmp.eq.s32.totalorder %s24, 1
      %p68 = por %p66, %p67
      %p69 = scmp.ne.s32.totalorder %s58, %s59
      %p70 = scmp.eq.s32.totalorder %s24, 0
      %p71 = por %p69, %p70
      %p72 = scmp.ne.s32.totalorder %s58, %s59
      %p73 = scmp.eq.s32.totalorder %s25, 1
      %p74 = por %p72, %p73
      %p76 = scmp.ne.s32.totalorder %s59, %s75
      %p77 = scmp.eq.s32.totalorder %s25, 0
      %p78 = por %p76, %p77
      %s79 = ssub.s32 %s19, %s26
      %p80 = scmp.eq.s32.totalorder %s79, 0
      %s82 = sadd.s32 %s81, 1
      %s83 = scalar_select %p80, %s81, %s82
      %p86 = pneg %p80
      %p87 = scmp.eq.s32.totalorder %s19, 1
      %p88 = por %p86, %p87
      %p89 = scmp.ne.s32.totalorder %s81, %s84
      %p90 = scmp.eq.s32.totalorder %s19, 0
      %p91 = por %p89, %p90
      %p92 = scmp.ne.s32.totalorder %s81, %s84
      %p93 = scmp.eq.s32.totalorder %s24, 1
      %p94 = por %p92, %p93
      %p95 = scmp.ne.s32.totalorder %s84, %s85
      %p96 = scmp.eq.s32.totalorder %s24, 0
      %p97 = por %p95, %p96
      %p98 = scmp.ne.s32.totalorder %s84, %s85
      %p99 = scmp.eq.s32.totalorder %s25, 1
      %p100 = por %p98, %p99
      %p102 = scmp.ne.s32.totalorder %s85, %s101
      %p103 = scmp.eq.s32.totalorder %s25, 0
      %p104 = por %p102, %p103
      %s105 = ssub.s32 %s19, %s26
      %p106 = scmp.eq.s32.totalorder %s105, 0
      %s108 = sadd.s32 %s107, 1
      %s109 = scalar_select %p106, %s107, %s108
      %p112 = pneg %p106
      %p113 = scmp.eq.s32.totalorder %s19, 1
      %p114 = por %p112, %p113
      %p115 = scmp.ne.s32.totalorder %s107, %s110
      %p116 = scmp.eq.s32.totalorder %s19, 0
      %p117 = por %p115, %p116
      %p118 = scmp.ne.s32.totalorder %s107, %s110
      %p119 = scmp.eq.s32.totalorder %s24, 1
      %p120 = por %p118, %p119
      %p121 = scmp.ne.s32.totalorder %s110, %s111
      %p122 = scmp.eq.s32.totalorder %s24, 0
      %p123 = por %p121, %p122
      %p124 = scmp.ne.s32.totalorder %s110, %s111
      %p125 = scmp.eq.s32.totalorder %s25, 1
      %p126 = por %p124, %p125
      %p128 = scmp.ne.s32.totalorder %s111, %s127
      %p129 = scmp.eq.s32.totalorder %s25, 0
      %p130 = por %p128, %p129
      %s132 = sadd.s32 %s131, 1
      %p135 = scmp.eq.s32.totalorder %s19, 1
      %p136 = scmp.ne.s32.totalorder %s131, %s133
      %p137 = scmp.eq.s32.totalorder %s19, 0
      %p138 = por %p136, %p137
      %p139 = scmp.ne.s32.totalorder %s131, %s133
      %p140 = scmp.eq.s32.totalorder %s24, 1
      %p141 = por %p139, %p140
      %p142 = scmp.ne.s32.totalorder %s133, %s134
      %p143 = scmp.eq.s32.totalorder %s24, 0
      %p144 = por %p142, %p143
      %p145 = scmp.ne.s32.totalorder %s133, %s134
      %p146 = scmp.eq.s32.totalorder %s25, 1
      %p147 = por %p145, %p146
      %p149 = scmp.ne.s32.totalorder %s134, %s148
      %p150 = scmp.eq.s32.totalorder %s25, 0
      %p151 = por %p149, %p150
      %s153 = sadd.s32 %s152, 1
      %p156 = scmp.eq.s32.totalorder %s19, 1
      %p157 = scmp.ne.s32.totalorder %s152, %s154
      %p158 = scmp.eq.s32.totalorder %s19, 0
      %p159 = por %p157, %p158
      %p160 = scmp.ne.s32.totalorder %s152, %s154
      %p161 = scmp.eq.s32.totalorder %s24, 1
      %p162 = por %p160, %p161
      %p163 = scmp.ne.s32.totalorder %s154, %s155
      %p164 = scmp.eq.s32.totalorder %s24, 0
      %p165 = por %p163, %p164
      %p166 = scmp.ne.s32.totalorder %s154, %s155
      %p167 = scmp.eq.s32.totalorder %s25, 1
      %p168 = por %p166, %p167
      %p170 = scmp.ne.s32.totalorder %s155, %s169
      %p171 = scmp.eq.s32.totalorder %s25, 0
      %p172 = por %p170, %p171
      %s174 = sadd.s32 %s173, 1
      %p177 = scmp.eq.s32.totalorder %s19, 1
      %p178 = scmp.ne.s32.totalorder %s173, %s175
      %p179 = scmp.eq.s32.totalorder %s19, 0
      %p180 = por %p178, %p179
      %p181 = scmp.ne.s32.totalorder %s173, %s175
      %p182 = scmp.eq.s32.totalorder %s24, 1
      %p183 = por %p181, %p182
      %p184 = scmp.ne.s32.totalorder %s175, %s176
      %p185 = scmp.eq.s32.totalorder %s24, 0
      %p186 = por %p184, %p185
      %p187 = scmp.ne.s32.totalorder %s175, %s176
      %p188 = scmp.eq.s32.totalorder %s25, 1
      %p189 = por %p187, %p188
      %p191 = scmp.ne.s32.totalorder %s176, %s190
      %p192 = scmp.eq.s32.totalorder %s25, 0
      %p193 = por %p191, %p192
      %s195 = sadd.s32 %s194, 1
      %p198 = scmp.eq.s32.totalorder %s19, 1
      %p199 = scmp.ne.s32.totalorder %s194, %s196
      %p200 = scmp.eq.s32.totalorder %s19, 0
      %p201 = por %p199, %p200
      %p202 = scmp.ne.s32.totalorder %s194, %s196
      %p203 = scmp.eq.s32.totalorder %s24, 1
      %p204 = por %p202, %p203
      %p205 = scmp.ne.s32.totalorder %s196, %s197
      %p206 = scmp.eq.s32.totalorder %s24, 0
      %p207 = por %p205, %p206
      %p208 = scmp.ne.s32.totalorder %s196, %s197
      %p209 = scmp.eq.s32.totalorder %s25, 1
      %p210 = por %p208, %p209
      %p212 = scmp.ne.s32.totalorder %s197, %s211
      %p213 = scmp.eq.s32.totalorder %s25, 0
      %p214 = por %p212, %p213
      %s215 = ssub.s32 %s19, %s26
      %p216 = scmp.eq.s32.totalorder %s215, 0
      %s218 = sadd.s32 %s217, 1
      %s219 = scalar_select %p216, %s217, %s218
      %p222 = pneg %p216
      %p223 = scmp.eq.s32.totalorder %s19, 1
      %p224 = por %p222, %p223
      %p225 = scmp.ne.s32.totalorder %s217, %s220
      %p226 = scmp.eq.s32.totalorder %s19, 0
      %p227 = por %p225, %p226
      %p228 = scmp.ne.s32.totalorder %s217, %s220
      %p229 = scmp.eq.s32.totalorder %s24, 1
      %p230 = por %p228, %p229
      %p231 = scmp.ne.s32.totalorder %s220, %s221
      %p232 = scmp.eq.s32.totalorder %s24, 0
      %p233 = por %p231, %p232
      %p234 = scmp.ne.s32.totalorder %s220, %s221
      %p235 = scmp.eq.s32.totalorder %s25, 1
      %p236 = por %p234, %p235
      %p238 = scmp.ne.s32.totalorder %s221, %s237
      %p239 = scmp.eq.s32.totalorder %s25, 0
      %p240 = por %p238, %p239
      %p241 = scmp.le.s32.totalorder 1, %s19
      %p242 = scmp.lt.s32.totalorder %s19, 3
      %p243 = pnand %p241, %p242
      %p244 = pneg %p243
      // Predicated region
      $region9: #{tpu_custom_call.1} parent=5 // pred_check
        _
      $region10: #{tpu_custom_call.1} parent=5 // pred_check_branch
        %246 = sbr.rel (%p243) target = $region12
      $region11: #{tpu_custom_call.1} parent=5 // pred_region
        %s247 = ssub.s32 %s19, 1
        // Predicated region
        $region13: #{tpu_custom_call.1} parent=11 // pred_check
          %p248 = pneg %p144
        $region14: #{tpu_custom_call.1} parent=11 // pred_check_branch
          %250 = sbr.rel (%p248) target = $region16
        $region15: #{tpu_custom_call.1} parent=11 // pred_region
          _
        $region16: #{tpu_custom_call.1} parent=11 // pred_fallthru
          _
        // Predicated region
        $region17: #{tpu_custom_call.1} parent=11 // pred_check
          %p251 = pneg %p165
        $region18: #{tpu_custom_call.1} parent=11 // pred_check_branch
          %253 = sbr.rel (%p251) target = $region20
        $region19: #{tpu_custom_call.1} parent=11 // pred_region
          _
        $region20: #{tpu_custom_call.1} parent=11 // pred_fallthru
          _
        // Predicated region
        $region21: #{tpu_custom_call.1} parent=11 // pred_check
          %p254 = pneg %p186
        $region22: #{tpu_custom_call.1} parent=11 // pred_check_branch
          %256 = sbr.rel (%p254) target = $region24
        $region23: #{tpu_custom_call.1} parent=11 // pred_region
          _
        $region24: #{tpu_custom_call.1} parent=11 // pred_fallthru
          _
        // Predicated region
        $region25: #{tpu_custom_call.1} parent=11 // pred_check
          %p257 = pneg %p207
        $region26: #{tpu_custom_call.1} parent=11 // pred_check_branch
          %259 = sbr.rel (%p257) target = $region28
        $region27: #{tpu_custom_call.1} parent=11 // pred_region
          _
        $region28: #{tpu_custom_call.1} parent=11 // pred_fallthru
          _
      $region12: #{tpu_custom_call.1} parent=5 // pred_fallthru
        _
      %p260 = scmp.lt.s32.totalorder %s19, 2
      // Predicated region
      $region29: #{tpu_custom_call.1} parent=5 // pred_check
        %p261 = pneg %p260
      $region30: #{tpu_custom_call.1} parent=5 // pred_check_branch
        %263 = sbr.rel (%p261) target = $region32
      $region31: #{tpu_custom_call.1} parent=5 // pred_region
        // Predicated region
        $region33: #{tpu_custom_call.1} parent=31 // pred_check
          %p264 = pneg %p39
        $region34: #{tpu_custom_call.1} parent=31 // pred_check_branch
          %266 = sbr.rel (%p264) target = $region36
        $region35: #{tpu_custom_call.1} parent=31 // pred_region
          %p267 = scmp.lt.s32.totalorder %s19, 1
          %s268 = scalar_select %p267, %s19, 1
          %s269 = smul.addr %s268, 32
          %s270 = smul.addr %s269, 4
          %s271 = scalar_lea.vmem %s0, %s270
        $region36: #{tpu_custom_call.1} parent=31 // pred_fallthru
          _
        // Predicated region
        $region37: #{tpu_custom_call.1} parent=31 // pred_check
          %p272 = pneg %p65
        $region38: #{tpu_custom_call.1} parent=31 // pred_check_branch
          %274 = sbr.rel (%p272) target = $region40
        $region39: #{tpu_custom_call.1} parent=31 // pred_region
          %p275 = scmp.lt.s32.totalorder %s19, 1
          %s276 = scalar_select %p275, %s19, 1
          %s277 = smul.addr %s276, 96
          %s278 = smul.addr %s277, 4
          %s279 = scalar_lea.vmem %s1, %s278
        $region40: #{tpu_custom_call.1} parent=31 // pred_fallthru
          _
        // Predicated region
        $region41: #{tpu_custom_call.1} parent=31 // pred_check
          %p280 = pneg %p91
        $region42: #{tpu_custom_call.1} parent=31 // pred_check_branch
          %282 = sbr.rel (%p280) target = $region44
        $region43: #{tpu_custom_call.1} parent=31 // pred_region
          %p283 = scmp.lt.s32.totalorder %s19, 1
          %s284 = scalar_select %p283, %s19, 1
          %s285 = smul.addr %s284, 8
          %s286 = scalar_lea.vmem %s2, %s285
        $region44: #{tpu_custom_call.1} parent=31 // pred_fallthru
          _
        // Predicated region
        $region45: #{tpu_custom_call.1} parent=31 // pred_check
          %p287 = pneg %p117
        $region46: #{tpu_custom_call.1} parent=31 // pred_check_branch
          %289 = sbr.rel (%p287) target = $region48
        $region47: #{tpu_custom_call.1} parent=31 // pred_region
          %p290 = scmp.lt.s32.totalorder %s19, 1
          %s291 = scalar_select %p290, %s19, 1
          %s292 = smul.addr %s291, 8
          %s293 = smul.addr %s292, 4
          %s294 = scalar_lea.vmem %s3, %s293
        $region48: #{tpu_custom_call.1} parent=31 // pred_fallthru
          _
      $region32: #{tpu_custom_call.1} parent=5 // pred_fallthru
        _
      %p295 = scmp.le.s32.totalorder 1, %s19
      %p296 = scmp.lt.s32.totalorder %s19, 3
      %p297 = pnand %p295, %p296
      %p298 = pneg %p297
      // Predicated region
      $region49: #{tpu_custom_call.1} parent=5 // pred_check
        _
      $region50: #{tpu_custom_call.1} parent=5 // pred_check_branch
        %300 = sbr.rel (%p297) target = $region52
      $region51: #{tpu_custom_call.1} parent=5 // pred_region
        %s301 = ssub.s32 %s19, 1
        %p302 = scmp.lt.s32.totalorder %s24, 1
        %s303 = scalar_select %p302, %s24, 1
        %s304 = smul.addr %s303, 32
        %s305 = smul.addr %s304, 4
        %s306 = scalar_lea.vmem %s0, %s305
        %p307 = pneg %p45
        %p308 = pneg %p42
        %p309 = scmp.lt.s32.totalorder %s24, 1
        %s310 = scalar_select %p309, %s24, 1
        %s311 = smul.addr %s310, 96
        %s312 = smul.addr %s311, 4
        %s313 = scalar_lea.vmem %s1, %s312
        %p314 = pneg %p71
        %p315 = pneg %p68
        %p316 = scmp.lt.s32.totalorder %s24, 1
        %s317 = scalar_select %p316, %s24, 1
        %s318 = smul.addr %s317, 8
        %s319 = scalar_lea.vmem %s2, %s318
        %p320 = pneg %p97
        %p321 = pneg %p94
        %p322 = scmp.lt.s32.totalorder %s24, 1
        %s323 = scalar_select %p322, %s24, 1
        %s324 = smul.addr %s323, 8
        %s325 = smul.addr %s324, 4
        %s326 = scalar_lea.vmem %s3, %s325
        %p327 = pneg %p123
        %p328 = pneg %p120
        %p329 = pneg %p144
        %p330 = pneg %p141
        %p331 = pneg %p165
        %p332 = pneg %p162
        %p333 = pneg %p186
        %p334 = pneg %p183
        %p335 = pneg %p207
        %p336 = pneg %p204
        %p337 = pneg %p233
        %p338 = pneg %p230
        %s339 = sand.u32 %s220, 1
        %s340 = scalar_lea.sflag [#allocation5], %s339
        %s341 = sand.u32 %s220, 1
        %s342 = smul.addr %s341, 2
        %s343 = scalar_lea.vmem [#allocation4], %s342
        %p344 = scmp.lt.s32.totalorder %s24, 1
        %s345 = scalar_select %p344, %s24, 1
        %s346 = smul.addr %s345, 32
        %s347 = smul.addr %s346, 4
        %s348 = scalar_lea.vmem %s0, %s347
        %p349 = scmp.lt.s32.totalorder %s24, 1
        %s350 = scalar_select %p349, %s24, 1
        %s351 = smul.addr %s350, 96
        %s352 = smul.addr %s351, 4
        %s353 = scalar_lea.vmem %s1, %s352
        %p354 = scmp.lt.s32.totalorder %s24, 1
        %s355 = scalar_select %p354, %s24, 1
        %s356 = smul.addr %s355, 8
        %s357 = scalar_lea.vmem %s2, %s356
        %p358 = scmp.lt.s32.totalorder %s24, 1
        %s359 = scalar_select %p358, %s24, 1
        %s360 = smul.addr %s359, 8
        %s361 = smul.addr %s360, 4
        %s362 = scalar_lea.vmem %s3, %s361
        %v364 = vld [vmem:[%s348] sm:$0xf]
        %v365 = vld [vmem:[%s348 + $0x4] sm:$0xf]
        %v366 = vld [vmem:[%s348 + $0x8] sm:$0xf]
        %v367 = vld [vmem:[%s348 + $0xc] sm:$0xf]
        %v368 = vld [vmem:[%s348 + $0x10] sm:$0xf]
        %v369 = vld [vmem:[%s348 + $0x14] sm:$0xf]
        %v370 = vld [vmem:[%s348 + $0x18] sm:$0xf]
        %v371 = vld [vmem:[%s348 + $0x1c] sm:$0xf]
        %v372 = vld [vmem:[%s353] sm:$0xf]
        %v373 = vld [vmem:[%s353 + $0x4] sm:$0xf]
        %v374 = vld [vmem:[%s353 + $0x8] sm:$0xf]
        %v375 = vld [vmem:[%s353 + $0xc] sm:$0xf]
        %v376 = vld [vmem:[%s353 + $0x10] sm:$0xf]
        %v377 = vld [vmem:[%s353 + $0x14] sm:$0xf]
        %v378 = vld [vmem:[%s353 + $0x18] sm:$0xf]
        %v379 = vld [vmem:[%s353 + $0x1c] sm:$0xf]
        %v380 = vld [vmem:[%s353 + $0x20] sm:$0xf]
        %v381 = vld [vmem:[%s353 + $0x24] sm:$0xf]
        %v382 = vld [vmem:[%s353 + $0x28] sm:$0xf]
        %v383 = vld [vmem:[%s353 + $0x2c] sm:$0xf]
        %v384 = vld [vmem:[%s353 + $0x30] sm:$0xf]
        %v385 = vld [vmem:[%s353 + $0x34] sm:$0xf]
        %v386 = vld [vmem:[%s353 + $0x38] sm:$0xf]
        %v387 = vld [vmem:[%s353 + $0x3c] sm:$0xf]
        %v388 = vld [vmem:[%s353 + $0x40] sm:$0xf]
        %v389 = vld [vmem:[%s353 + $0x44] sm:$0xf]
        %v390 = vld [vmem:[%s353 + $0x48] sm:$0xf]
        %v391 = vld [vmem:[%s353 + $0x4c] sm:$0xf]
        %v392 = vld [vmem:[%s353 + $0x50] sm:$0xf]
        %v393 = vld [vmem:[%s353 + $0x54] sm:$0xf]
        %v394 = vld [vmem:[%s353 + $0x58] sm:$0xf]
        %v395 = vld [vmem:[%s353 + $0x5c] sm:$0xf]
        %v404 = vunpack.c.l.b16 %v364
        %v405 = vunpack.c.l.b16 %v365
        %v406 = vunpack.c.l.b16 %v366
        %v407 = vunpack.c.l.b16 %v367
        %v408 = vunpack.c.l.b16 %v368
        %v409 = vunpack.c.l.b16 %v369
        %v410 = vunpack.c.l.b16 %v370
        %v411 = vunpack.c.l.b16 %v371
        %v412 = vpack.c.b16 %v405, %v404
        %v413 = vpack.c.b16 %v407, %v406
        %v414 = vpack.c.b16 %v409, %v408
        %v415 = vpack.c.b16 %v411, %v410
        %v440 = vunpack.c.l.b16 %v372
        %v441 = vunpack.c.l.b16 %v373
        %v442 = vunpack.c.l.b16 %v374
        %v443 = vunpack.c.l.b16 %v375
        %v444 = vunpack.c.l.b16 %v376
        %v445 = vunpack.c.l.b16 %v377
        %v446 = vunpack.c.l.b16 %v378
        %v447 = vunpack.c.l.b16 %v379
        %v448 = vunpack.c.l.b16 %v380
        %v449 = vunpack.c.l.b16 %v381
        %v450 = vunpack.c.l.b16 %v382
        %v451 = vunpack.c.l.b16 %v383
        %v452 = vunpack.c.l.b16 %v384
        %v453 = vunpack.c.l.b16 %v385
        %v454 = vunpack.c.l.b16 %v386
        %v455 = vunpack.c.l.b16 %v387
        %v456 = vunpack.c.l.b16 %v388
        %v457 = vunpack.c.l.b16 %v389
        %v458 = vunpack.c.l.b16 %v390
        %v459 = vunpack.c.l.b16 %v391
        %v460 = vunpack.c.l.b16 %v392
        %v461 = vunpack.c.l.b16 %v393
        %v462 = vunpack.c.l.b16 %v394
        %v463 = vunpack.c.l.b16 %v395
        %v464 = vpack.c.b16 %v441, %v440
        %v465 = vpack.c.b16 %v443, %v442
        %v466 = vpack.c.b16 %v445, %v444
        %v467 = vpack.c.b16 %v447, %v446
        %v468 = vpack.c.b16 %v449, %v448
        %v469 = vpack.c.b16 %v451, %v450
        %v470 = vpack.c.b16 %v453, %v452
        %v471 = vpack.c.b16 %v455, %v454
        %v472 = vpack.c.b16 %v457, %v456
        %v473 = vpack.c.b16 %v459, %v458
        %v474 = vpack.c.b16 %v461, %v460
        %v475 = vpack.c.b16 %v463, %v462
        %vm476 = vcmask 261120
        %v478 = vsel %vm476, %v412, 0
        %v481 = vsel %vm476, %v413, 0
        %v484 = vsel %vm476, %v414, 0
        %v487 = vsel %vm476, %v415, 0
        %v490 = vsel %vm476, %v464, 0
        %v493 = vsel %vm476, %v465, 0
        %v496 = vsel %vm476, %v466, 0
        %v499 = vsel %vm476, %v467, 0
        %v502 = vsel %vm476, %v468, 0
        %v505 = vsel %vm476, %v469, 0
        %v508 = vsel %vm476, %v470, 0
        %v511 = vsel %vm476, %v471, 0
        %v514 = vsel %vm476, %v472, 0
        %v517 = vsel %vm476, %v473, 0
        %v520 = vsel %vm476, %v474, 0
        %v523 = vsel %vm476, %v475, 0
        %525 = vmatpush.bf16.xpose.msra.mxu0 %v511
        %526 = vmatpush.bf16.xpose.msra.mxu0 %v508
        %527 = vmatpush.bf16.xpose.msra.mxu0 %v505
        %528 = vmatpush.bf16.xpose.msra.mxu0 %v502
        %529 = vmatpush.bf16.xpose.msra.mxu0 %v499
        %530 = vmatpush.bf16.xpose.msra.mxu0 %v496
        %531 = vmatpush.bf16.xpose.msra.mxu0 %v493
        %532 = vmatpush.bf16.xpose.msra.mxu0 %v490
        %533 = vmatmul.bf16.gmra.mxu0 %v478
        %v534 = vpop.f32.mrf.mxu0
        %v535 = vadd.f32 0.0, %v534
        %v536 = vpop.f32.mrf.mxu0
        %v537 = vadd.f32 0.0, %v536
        %538 = vmatmul.bf16.gmra.mxu0 %v481
        %v539 = vpop.f32.mrf.mxu0
        %v540 = vadd.f32 0.0, %v539
        %v541 = vpop.f32.mrf.mxu0
        %v542 = vadd.f32 0.0, %v541
        %543 = vmatmul.bf16.gmra.mxu0 %v484
        %v544 = vpop.f32.mrf.mxu0
        %v545 = vadd.f32 0.0, %v544
        %v546 = vpop.f32.mrf.mxu0
        %v547 = vadd.f32 0.0, %v546
        %548 = vmatmul.bf16.gmra.mxu0 %v487
        %v549 = vpop.f32.mrf.mxu0
        %v550 = vadd.f32 0.0, %v549
        %v551 = vpop.f32.mrf.mxu0
        %v552 = vadd.f32 0.0, %v551
        %553 = vdwg.mxu0
        %554 = vmatpush.bf16.xpose.msra.mxu0 0
        %555 = vmatpush.bf16.xpose.msra.mxu0 0
        %556 = vmatpush.bf16.xpose.msra.mxu0 0
        %557 = vmatpush.bf16.xpose.msra.mxu0 0
        %558 = vmatpush.bf16.xpose.msra.mxu0 %v523
        %559 = vmatpush.bf16.xpose.msra.mxu0 %v520
        %560 = vmatpush.bf16.xpose.msra.mxu0 %v517
        %561 = vmatpush.bf16.xpose.msra.mxu0 %v514
        %562 = vmatmul.bf16.gmra.mxu0 %v478
        %v563 = vpop.f32.mrf.mxu0
        %v564 = vadd.f32 0.0, %v563
        %v565 = vpop.f32.mrf.mxu0
        %v566 = vadd.f32 0.0, %v565
        %567 = vmatmul.bf16.gmra.mxu0 %v481
        %v568 = vpop.f32.mrf.mxu0
        %v569 = vadd.f32 0.0, %v568
        %v570 = vpop.f32.mrf.mxu0
        %v571 = vadd.f32 0.0, %v570
        %572 = vmatmul.bf16.gmra.mxu0 %v484
        %v573 = vpop.f32.mrf.mxu0
        %v574 = vadd.f32 0.0, %v573
        %v575 = vpop.f32.mrf.mxu0
        %v576 = vadd.f32 0.0, %v575
        %577 = vmatmul.bf16.gmra.mxu0 %v487
        %v578 = vpop.f32.mrf.mxu0
        %v579 = vadd.f32 0.0, %v578
        %v580 = vpop.f32.mrf.mxu0
        %v581 = vadd.f32 0.0, %v580
        %582 = vdwg.mxu0
        %vm583 = vcmask 523264
        %v584 = vsel %vm583, %v564, -inf
        %v585 = vmax.f32 %v535, %v584
        %586 = vmax.xlane.f32.xlu0 %v585
        %v587 = vpop.xlane.xlu0 %586
        %v588 = vsel %vm583, %v566, -inf
        %v589 = vmax.f32 %v537, %v588
        %590 = vmax.xlane.f32.xlu0 %v589
        %v591 = vpop.xlane.xlu0 %590
        %v592 = vsel %vm583, %v569, -inf
        %v593 = vmax.f32 %v540, %v592
        %594 = vmax.xlane.f32.xlu0 %v593
        %v595 = vpop.xlane.xlu0 %594
        %v596 = vsel %vm583, %v571, -inf
        %v597 = vmax.f32 %v542, %v596
        %598 = vmax.xlane.f32.xlu0 %v597
        %v599 = vpop.xlane.xlu0 %598
        %v600 = vsel %vm583, %v574, -inf
        %v601 = vmax.f32 %v545, %v600
        %602 = vmax.xlane.f32.xlu0 %v601
        %v603 = vpop.xlane.xlu0 %602
        %v604 = vsel %vm583, %v576, -inf
        %v605 = vmax.f32 %v547, %v604
        %606 = vmax.xlane.f32.xlu0 %v605
        %v607 = vpop.xlane.xlu0 %606
        %v608 = vsel %vm583, %v579, -inf
        %v609 = vmax.f32 %v550, %v608
        %610 = vmax.xlane.f32.xlu0 %v609
        %v611 = vpop.xlane.xlu0 %610
        %v612 = vsel %vm583, %v581, -inf
        %v613 = vmax.f32 %v552, %v612
        %614 = vmax.xlane.f32.xlu0 %v613
        %v615 = vpop.xlane.xlu0 %614
        %v616 = vsub.f32 %v535, %v587
        %v617 = vsub.f32 %v564, %v587
        %v618 = vsub.f32 %v537, %v591
        %v619 = vsub.f32 %v566, %v591
        %v620 = vsub.f32 %v540, %v595
        %v621 = vsub.f32 %v569, %v595
        %v622 = vsub.f32 %v542, %v599
        %v623 = vsub.f32 %v571, %v599
        %v624 = vsub.f32 %v545, %v603
        %v625 = vsub.f32 %v574, %v603
        %v626 = vsub.f32 %v547, %v607
        %v627 = vsub.f32 %v576, %v607
        %v628 = vsub.f32 %v550, %v611
        %v629 = vsub.f32 %v579, %v611
        %v630 = vsub.f32 %v552, %v615
        %v631 = vsub.f32 %v581, %v615
        %v632 = vmul.f32 %v616, 1.442695
        %v633 = vpow.pop %v632
        %v634 = vmul.f32 %v617, 1.442695
        %v635 = vpow.pop %v634
        %v636 = vmul.f32 %v618, 1.442695
        %v637 = vpow.pop %v636
        %v638 = vmul.f32 %v619, 1.442695
        %v639 = vpow.pop %v638
        %v640 = vmul.f32 %v620, 1.442695
        %v641 = vpow.pop %v640
        %v642 = vmul.f32 %v621, 1.442695
        %v643 = vpow.pop %v642
        %v644 = vmul.f32 %v622, 1.442695
        %v645 = vpow.pop %v644
        %v646 = vmul.f32 %v623, 1.442695
        %v647 = vpow.pop %v646
        %v648 = vmul.f32 %v624, 1.442695
        %v649 = vpow.pop %v648
        %v650 = vmul.f32 %v625, 1.442695
        %v651 = vpow.pop %v650
        %v652 = vmul.f32 %v626, 1.442695
        %v653 = vpow.pop %v652
        %v654 = vmul.f32 %v627, 1.442695
        %v655 = vpow.pop %v654
        %v656 = vmul.f32 %v628, 1.442695
        %v657 = vpow.pop %v656
        %v658 = vmul.f32 %v629, 1.442695
        %v659 = vpow.pop %v658
        %v660 = vmul.f32 %v630, 1.442695
        %v661 = vpow.pop %v660
        %v662 = vmul.f32 %v631, 1.442695
        %v663 = vpow.pop %v662
        %v664 = vsel %vm583, %v635, 0.0
        %v665 = vadd.f32 %v633, %v664
        %666 = vadd.xlane.f32.xlu0 %v665
        %v667 = vpop.xlane.xlu0 %666
        %v668 = vsel %vm583, %v639, 0.0
        %v669 = vadd.f32 %v637, %v668
        %670 = vadd.xlane.f32.xlu0 %v669
        %v671 = vpop.xlane.xlu0 %670
        %v672 = vsel %vm583, %v643, 0.0
        %v673 = vadd.f32 %v641, %v672
        %674 = vadd.xlane.f32.xlu0 %v673
        %v675 = vpop.xlane.xlu0 %674
        %v676 = vsel %vm583, %v647, 0.0
        %v677 = vadd.f32 %v645, %v676
        %678 = vadd.xlane.f32.xlu0 %v677
        %v679 = vpop.xlane.xlu0 %678
        %v680 = vsel %vm583, %v651, 0.0
        %v681 = vadd.f32 %v649, %v680
        %682 = vadd.xlane.f32.xlu0 %v681
        %v683 = vpop.xlane.xlu0 %682
        %v684 = vsel %vm583, %v655, 0.0
        %v685 = vadd.f32 %v653, %v684
        %686 = vadd.xlane.f32.xlu0 %v685
        %v687 = vpop.xlane.xlu0 %686
        %v688 = vsel %vm583, %v659, 0.0
        %v689 = vadd.f32 %v657, %v688
        %690 = vadd.xlane.f32.xlu0 %v689
        %v691 = vpop.xlane.xlu0 %690
        %v692 = vsel %vm583, %v663, 0.0
        %v693 = vadd.f32 %v661, %v692
        %694 = vadd.xlane.f32.xlu0 %v693
        %v695 = vpop.xlane.xlu0 %694
        %v696 = vrcp.pop %v667
        %v697 = vrcp.pop %v671
        %v698 = vrcp.pop %v675
        %v699 = vrcp.pop %v679
        %v700 = vrcp.pop %v683
        %v701 = vrcp.pop %v687
        %v702 = vrcp.pop %v691
        %v703 = vrcp.pop %v695
        %v704 = vmul.f32 %v633, %v696
        %v705 = vmul.f32 %v635, %v696
        %v706 = vmul.f32 %v637, %v697
        %v707 = vmul.f32 %v639, %v697
        %v708 = vmul.f32 %v641, %v698
        %v709 = vmul.f32 %v643, %v698
        %v710 = vmul.f32 %v645, %v699
        %v711 = vmul.f32 %v647, %v699
        %v712 = vmul.f32 %v649, %v700
        %v713 = vmul.f32 %v651, %v700
        %v714 = vmul.f32 %v653, %v701
        %v715 = vmul.f32 %v655, %v701
        %v716 = vmul.f32 %v657, %v702
        %v717 = vmul.f32 %v659, %v702
        %v718 = vmul.f32 %v661, %v703
        %v719 = vmul.f32 %v663, %v703
        %v720 = vld [vmem:[%s357] sm:$0x3]
        %v722 = vperm.slane %v720, 0
        %v723 = vperm.slane %v720, 1
        %v725 = vsel %vm583, %v723, 0
        %v728 = vsel %vm583, %v705, 0
        %v731 = vsel %vm583, %v707, 0
        %v734 = vsel %vm583, %v709, 0
        %v737 = vsel %vm583, %v711, 0
        %v740 = vsel %vm583, %v713, 0
        %v743 = vsel %vm583, %v715, 0
        %v746 = vsel %vm583, %v717, 0
        %v749 = vsel %vm583, %v719, 0
        %751 = vmatpush.xpose.msra.mxu0 0.0
        %752 = vmatpush.xpose.msra.mxu0 0.0
        %753 = vmatpush.xpose.msra.mxu0 0.0
        %754 = vmatpush.xpose.msra.mxu0 0.0
        %755 = vmatpush.xpose.msra.mxu0 0.0
        %756 = vmatpush.xpose.msra.mxu0 0.0
        %757 = vmatpush.xpose.msra.mxu0 0.0
        %758 = vmatpush.xpose.msra.mxu0 0.0
        %759 = vmatpush.xpose.msra.mxu0 %v718
        %760 = vmatpush.xpose.msra.mxu0 %v716
        %761 = vmatpush.xpose.msra.mxu0 %v714
        %762 = vmatpush.xpose.msra.mxu0 %v712
        %763 = vmatpush.xpose.msra.mxu0 %v710
        %764 = vmatpush.xpose.msra.mxu0 %v708
        %765 = vmatpush.xpose.msra.mxu0 %v706
        %766 = vmatpush.xpose.msra.mxu0 %v704
        %767 = vmatmul.f32.gmra.mxu0 %v722
        %v768 = vpop.f32.mrf.mxu0
        %v769 = vadd.f32 0.0, %v768
        %770 = vdwg.mxu0
        %771 = vmatpush.xpose.msra.mxu0 0.0
        %772 = vmatpush.xpose.msra.mxu0 0.0
        %773 = vmatpush.xpose.msra.mxu0 0.0
        %774 = vmatpush.xpose.msra.mxu0 0.0
        %775 = vmatpush.xpose.msra.mxu0 0.0
        %776 = vmatpush.xpose.msra.mxu0 0.0
        %777 = vmatpush.xpose.msra.mxu0 0.0
        %778 = vmatpush.xpose.msra.mxu0 0.0
        %779 = vmatpush.xpose.msra.mxu0 %v749
        %780 = vmatpush.xpose.msra.mxu0 %v746
        %781 = vmatpush.xpose.msra.mxu0 %v743
        %782 = vmatpush.xpose.msra.mxu0 %v740
        %783 = vmatpush.xpose.msra.mxu0 %v737
        %784 = vmatpush.xpose.msra.mxu0 %v734
        %785 = vmatpush.xpose.msra.mxu0 %v731
        %786 = vmatpush.xpose.msra.mxu0 %v728
        %787 = vmatmul.f32.gmra.mxu0 %v725
        %v788 = vpop.f32.mrf.mxu0
        %v789 = vadd.f32 %v769, %v788
        %790 = vdwg.mxu0
        %v791 = vlaneseq
        %vm792 = vcmp.ge.s32.totalorder %v791, 0
        %vm793 = vcmp.lt.s32.totalorder %v791, 64
        %vm794 = vmand %vm792, %vm793
        %795 = vst.msk [vmem:[#allocation2] sm:$0x1] %vm794, %v789
        %s796 = scalar_lea.vmem %s348, 32
        %v797 = vld [vmem:[%s796] sm:$0xf]
        %v798 = vld [vmem:[%s796 + $0x4] sm:$0xf]
        %v799 = vld [vmem:[%s796 + $0x8] sm:$0xf]
        %v800 = vld [vmem:[%s796 + $0xc] sm:$0xf]
        %v801 = vld [vmem:[%s796 + $0x10] sm:$0xf]
        %v802 = vld [vmem:[%s796 + $0x14] sm:$0xf]
        %v803 = vld [vmem:[%s796 + $0x18] sm:$0xf]
        %v804 = vld [vmem:[%s796 + $0x1c] sm:$0xf]
        %s805 = scalar_lea.vmem %s353, 96
        %v806 = vld [vmem:[%s805] sm:$0xf]
        %v807 = vld [vmem:[%s805 + $0x4] sm:$0xf]
        %v808 = vld [vmem:[%s805 + $0x8] sm:$0xf]
        %v809 = vld [vmem:[%s805 + $0xc] sm:$0xf]
        %v810 = vld [vmem:[%s805 + $0x10] sm:$0xf]
        %v811 = vld [vmem:[%s805 + $0x14] sm:$0xf]
        %v812 = vld [vmem:[%s805 + $0x18] sm:$0xf]
        %v813 = vld [vmem:[%s805 + $0x1c] sm:$0xf]
        %v814 = vld [vmem:[%s805 + $0x20] sm:$0xf]
        %v815 = vld [vmem:[%s805 + $0x24] sm:$0xf]
        %v816 = vld [vmem:[%s805 + $0x28] sm:$0xf]
        %v817 = vld [vmem:[%s805 + $0x2c] sm:$0xf]
        %v818 = vld [vmem:[%s805 + $0x30] sm:$0xf]
        %v819 = vld [vmem:[%s805 + $0x34] sm:$0xf]
        %v820 = vld [vmem:[%s805 + $0x38] sm:$0xf]
        %v821 = vld [vmem:[%s805 + $0x3c] sm:$0xf]
        %v822 = vld [vmem:[%s805 + $0x40] sm:$0xf]
        %v823 = vld [vmem:[%s805 + $0x44] sm:$0xf]
        %v824 = vld [vmem:[%s805 + $0x48] sm:$0xf]
        %v825 = vld [vmem:[%s805 + $0x4c] sm:$0xf]
        %v826 = vld [vmem:[%s805 + $0x50] sm:$0xf]
        %v827 = vld [vmem:[%s805 + $0x54] sm:$0xf]
        %v828 = vld [vmem:[%s805 + $0x58] sm:$0xf]
        %v829 = vld [vmem:[%s805 + $0x5c] sm:$0xf]
        %v838 = vunpack.c.l.b16 %v797
        %v839 = vunpack.c.l.b16 %v798
        %v840 = vunpack.c.l.b16 %v799
        %v841 = vunpack.c.l.b16 %v800
        %v842 = vunpack.c.l.b16 %v801
        %v843 = vunpack.c.l.b16 %v802
        %v844 = vunpack.c.l.b16 %v803
        %v845 = vunpack.c.l.b16 %v804
        %v846 = vpack.c.b16 %v839, %v838
        %v847 = vpack.c.b16 %v841, %v840
        %v848 = vpack.c.b16 %v843, %v842
        %v849 = vpack.c.b16 %v845, %v844
        %v874 = vunpack.c.l.b16 %v806
        %v875 = vunpack.c.l.b16 %v807
        %v876 = vunpack.c.l.b16 %v808
        %v877 = vunpack.c.l.b16 %v809
        %v878 = vunpack.c.l.b16 %v810
        %v879 = vunpack.c.l.b16 %v811
        %v880 = vunpack.c.l.b16 %v812
        %v881 = vunpack.c.l.b16 %v813
        %v882 = vunpack.c.l.b16 %v814
        %v883 = vunpack.c.l.b16 %v815
        %v884 = vunpack.c.l.b16 %v816
        %v885 = vunpack.c.l.b16 %v817
        %v886 = vunpack.c.l.b16 %v818
        %v887 = vunpack.c.l.b16 %v819
        %v888 = vunpack.c.l.b16 %v820
        %v889 = vunpack.c.l.b16 %v821
        %v890 = vunpack.c.l.b16 %v822
        %v891 = vunpack.c.l.b16 %v823
        %v892 = vunpack.c.l.b16 %v824
        %v893 = vunpack.c.l.b16 %v825
        %v894 = vunpack.c.l.b16 %v826
        %v895 = vunpack.c.l.b16 %v827
        %v896 = vunpack.c.l.b16 %v828
        %v897 = vunpack.c.l.b16 %v829
        %v898 = vpack.c.b16 %v875, %v874
        %v899 = vpack.c.b16 %v877, %v876
        %v900 = vpack.c.b16 %v879, %v878
        %v901 = vpack.c.b16 %v881, %v880
        %v902 = vpack.c.b16 %v883, %v882
        %v903 = vpack.c.b16 %v885, %v884
        %v904 = vpack.c.b16 %v887, %v886
        %v905 = vpack.c.b16 %v889, %v888
        %v906 = vpack.c.b16 %v891, %v890
        %v907 = vpack.c.b16 %v893, %v892
        %v908 = vpack.c.b16 %v895, %v894
        %v909 = vpack.c.b16 %v897, %v896
        %v911 = vsel %vm476, %v846, 0
        %v914 = vsel %vm476, %v847, 0
        %v917 = vsel %vm476, %v848, 0
        %v920 = vsel %vm476, %v849, 0
        %v923 = vsel %vm476, %v898, 0
        %v926 = vsel %vm476, %v899, 0
        %v929 = vsel %vm476, %v900, 0
        %v932 = vsel %vm476, %v901, 0
        %v935 = vsel %vm476, %v902, 0
        %v938 = vsel %vm476, %v903, 0
        %v941 = vsel %vm476, %v904, 0
        %v944 = vsel %vm476, %v905, 0
        %v947 = vsel %vm476, %v906, 0
        %v950 = vsel %vm476, %v907, 0
        %v953 = vsel %vm476, %v908, 0
        %v956 = vsel %vm476, %v909, 0
        %958 = vmatpush.bf16.xpose.msra.mxu0 %v944
        %959 = vmatpush.bf16.xpose.msra.mxu0 %v941
        %960 = vmatpush.bf16.xpose.msra.mxu0 %v938
        %961 = vmatpush.bf16.xpose.msra.mxu0 %v935
        %962 = vmatpush.bf16.xpose.msra.mxu0 %v932
        %963 = vmatpush.bf16.xpose.msra.mxu0 %v929
        %964 = vmatpush.bf16.xpose.msra.mxu0 %v926
        %965 = vmatpush.bf16.xpose.msra.mxu0 %v923
        %966 = vmatmul.bf16.gmra.mxu0 %v911
        %v967 = vpop.f32.mrf.mxu0
        %v968 = vadd.f32 0.0, %v967
        %v969 = vpop.f32.mrf.mxu0
        %v970 = vadd.f32 0.0, %v969
        %971 = vmatmul.bf16.gmra.mxu0 %v914
        %v972 = vpop.f32.mrf.mxu0
        %v973 = vadd.f32 0.0, %v972
        %v974 = vpop.f32.mrf.mxu0
        %v975 = vadd.f32 0.0, %v974
        %976 = vmatmul.bf16.gmra.mxu0 %v917
        %v977 = vpop.f32.mrf.mxu0
        %v978 = vadd.f32 0.0, %v977
        %v979 = vpop.f32.mrf.mxu0
        %v980 = vadd.f32 0.0, %v979
        %981 = vmatmul.bf16.gmra.mxu0 %v920
        %v982 = vpop.f32.mrf.mxu0
        %v983 = vadd.f32 0.0, %v982
        %v984 = vpop.f32.mrf.mxu0
        %v985 = vadd.f32 0.0, %v984
        %986 = vdwg.mxu0
        %987 = vmatpush.bf16.xpose.msra.mxu0 0
        %988 = vmatpush.bf16.xpose.msra.mxu0 0
        %989 = vmatpush.bf16.xpose.msra.mxu0 0
        %990 = vmatpush.bf16.xpose.msra.mxu0 0
        %991 = vmatpush.bf16.xpose.msra.mxu0 %v956
        %992 = vmatpush.bf16.xpose.msra.mxu0 %v953
        %993 = vmatpush.bf16.xpose.msra.mxu0 %v950
        %994 = vmatpush.bf16.xpose.msra.mxu0 %v947
        %995 = vmatmul.bf16.gmra.mxu0 %v911
        %v996 = vpop.f32.mrf.mxu0
        %v997 = vadd.f32 0.0, %v996
        %v998 = vpop.f32.mrf.mxu0
        %v999 = vadd.f32 0.0, %v998
        %1000 = vmatmul.bf16.gmra.mxu0 %v914
        %v1001 = vpop.f32.mrf.mxu0
        %v1002 = vadd.f32 0.0, %v1001
        %v1003 = vpop.f32.mrf.mxu0
        %v1004 = vadd.f32 0.0, %v1003
        %1005 = vmatmul.bf16.gmra.mxu0 %v917
        %v1006 = vpop.f32.mrf.mxu0
        %v1007 = vadd.f32 0.0, %v1006
        %v1008 = vpop.f32.mrf.mxu0
        %v1009 = vadd.f32 0.0, %v1008
        %1010 = vmatmul.bf16.gmra.mxu0 %v920
        %v1011 = vpop.f32.mrf.mxu0
        %v1012 = vadd.f32 0.0, %v1011
        %v1013 = vpop.f32.mrf.mxu0
        %v1014 = vadd.f32 0.0, %v1013
        %1015 = vdwg.mxu0
        %v1016 = vsel %vm583, %v997, -inf
        %v1017 = vmax.f32 %v968, %v1016
        %1018 = vmax.xlane.f32.xlu0 %v1017
        %v1019 = vpop.xlane.xlu0 %1018
        %v1020 = vsel %vm583, %v999, -inf
        %v1021 = vmax.f32 %v970, %v1020
        %1022 = vmax.xlane.f32.xlu0 %v1021
        %v1023 = vpop.xlane.xlu0 %1022
        %v1024 = vsel %vm583, %v1002, -inf
        %v1025 = vmax.f32 %v973, %v1024
        %1026 = vmax.xlane.f32.xlu0 %v1025
        %v1027 = vpop.xlane.xlu0 %1026
        %v1028 = vsel %vm583, %v1004, -inf
        %v1029 = vmax.f32 %v975, %v1028
        %1030 = vmax.xlane.f32.xlu0 %v1029
        %v1031 = vpop.xlane.xlu0 %1030
        %v1032 = vsel %vm583, %v1007, -inf
        %v1033 = vmax.f32 %v978, %v1032
        %1034 = vmax.xlane.f32.xlu0 %v1033
        %v1035 = vpop.xlane.xlu0 %1034
        %v1036 = vsel %vm583, %v1009, -inf
        %v1037 = vmax.f32 %v980, %v1036
        %1038 = vmax.xlane.f32.xlu0 %v1037
        %v1039 = vpop.xlane.xlu0 %1038
        %v1040 = vsel %vm583, %v1012, -inf
        %v1041 = vmax.f32 %v983, %v1040
        %1042 = vmax.xlane.f32.xlu0 %v1041
        %v1043 = vpop.xlane.xlu0 %1042
        %v1044 = vsel %vm583, %v1014, -inf
        %v1045 = vmax.f32 %v985, %v1044
        %1046 = vmax.xlane.f32.xlu0 %v1045
        %v1047 = vpop.xlane.xlu0 %1046
        %v1048 = vsub.f32 %v968, %v1019
        %v1049 = vsub.f32 %v997, %v1019
        %v1050 = vsub.f32 %v970, %v1023
        %v1051 = vsub.f32 %v999, %v1023
        %v1052 = vsub.f32 %v973, %v1027
        %v1053 = vsub.f32 %v1002, %v1027
        %v1054 = vsub.f32 %v975, %v1031
        %v1055 = vsub.f32 %v1004, %v1031
        %v1056 = vsub.f32 %v978, %v1035
        %v1057 = vsub.f32 %v1007, %v1035
        %v1058 = vsub.f32 %v980, %v1039
        %v1059 = vsub.f32 %v1009, %v1039
        %v1060 = vsub.f32 %v983, %v1043
        %v1061 = vsub.f32 %v1012, %v1043
        %v1062 = vsub.f32 %v985, %v1047
        %v1063 = vsub.f32 %v1014, %v1047
        %v1064 = vmul.f32 %v1048, 1.442695
        %v1065 = vpow.pop %v1064
        %v1066 = vmul.f32 %v1049, 1.442695
        %v1067 = vpow.pop %v1066
        %v1068 = vmul.f32 %v1050, 1.442695
        %v1069 = vpow.pop %v1068
        %v1070 = vmul.f32 %v1051, 1.442695
        %v1071 = vpow.pop %v1070
        %v1072 = vmul.f32 %v1052, 1.442695
        %v1073 = vpow.pop %v1072
        %v1074 = vmul.f32 %v1053, 1.442695
        %v1075 = vpow.pop %v1074
        %v1076 = vmul.f32 %v1054, 1.442695
        %v1077 = vpow.pop %v1076
        %v1078 = vmul.f32 %v1055, 1.442695
        %v1079 = vpow.pop %v1078
        %v1080 = vmul.f32 %v1056, 1.442695
        %v1081 = vpow.pop %v1080
        %v1082 = vmul.f32 %v1057, 1.442695
        %v1083 = vpow.pop %v1082
        %v1084 = vmul.f32 %v1058, 1.442695
        %v1085 = vpow.pop %v1084
        %v1086 = vmul.f32 %v1059, 1.442695
        %v1087 = vpow.pop %v1086
        %v1088 = vmul.f32 %v1060, 1.442695
        %v1089 = vpow.pop %v1088
        %v1090 = vmul.f32 %v1061, 1.442695
        %v1091 = vpow.pop %v1090
        %v1092 = vmul.f32 %v1062, 1.442695
        %v1093 = vpow.pop %v1092
        %v1094 = vmul.f32 %v1063, 1.442695
        %v1095 = vpow.pop %v1094
        %v1096 = vsel %vm583, %v1067, 0.0
        %v1097 = vadd.f32 %v1065, %v1096
        %1098 = vadd.xlane.f32.xlu0 %v1097
        %v1099 = vpop.xlane.xlu0 %1098
        %v1100 = vsel %vm583, %v1071, 0.0
        %v1101 = vadd.f32 %v1069, %v1100
        %1102 = vadd.xlane.f32.xlu0 %v1101
        %v1103 = vpop.xlane.xlu0 %1102
        %v1104 = vsel %vm583, %v1075, 0.0
        %v1105 = vadd.f32 %v1073, %v1104
        %1106 = vadd.xlane.f32.xlu0 %v1105
        %v1107 = vpop.xlane.xlu0 %1106
        %v1108 = vsel %vm583, %v1079, 0.0
        %v1109 = vadd.f32 %v1077, %v1108
        %1110 = vadd.xlane.f32.xlu0 %v1109
        %v1111 = vpop.xlane.xlu0 %1110
        %v1112 = vsel %vm583, %v1083, 0.0
        %v1113 = vadd.f32 %v1081, %v1112
        %1114 = vadd.xlane.f32.xlu0 %v1113
        %v1115 = vpop.xlane.xlu0 %1114
        %v1116 = vsel %vm583, %v1087, 0.0
        %v1117 = vadd.f32 %v1085, %v1116
        %1118 = vadd.xlane.f32.xlu0 %v1117
        %v1119 = vpop.xlane.xlu0 %1118
        %v1120 = vsel %vm583, %v1091, 0.0
        %v1121 = vadd.f32 %v1089, %v1120
        %1122 = vadd.xlane.f32.xlu0 %v1121
        %v1123 = vpop.xlane.xlu0 %1122
        %v1124 = vsel %vm583, %v1095, 0.0
        %v1125 = vadd.f32 %v1093, %v1124
        %1126 = vadd.xlane.f32.xlu0 %v1125
        %v1127 = vpop.xlane.xlu0 %1126
        %v1128 = vrcp.pop %v1099
        %v1129 = vrcp.pop %v1103
        %v1130 = vrcp.pop %v1107
        %v1131 = vrcp.pop %v1111
        %v1132 = vrcp.pop %v1115
        %v1133 = vrcp.pop %v1119
        %v1134 = vrcp.pop %v1123
        %v1135 = vrcp.pop %v1127
        %v1136 = vmul.f32 %v1065, %v1128
        %v1137 = vmul.f32 %v1067, %v1128
        %v1138 = vmul.f32 %v1069, %v1129
        %v1139 = vmul.f32 %v1071, %v1129
        %v1140 = vmul.f32 %v1073, %v1130
        %v1141 = vmul.f32 %v1075, %v1130
        %v1142 = vmul.f32 %v1077, %v1131
        %v1143 = vmul.f32 %v1079, %v1131
        %v1144 = vmul.f32 %v1081, %v1132
        %v1145 = vmul.f32 %v1083, %v1132
        %v1146 = vmul.f32 %v1085, %v1133
        %v1147 = vmul.f32 %v1087, %v1133
        %v1148 = vmul.f32 %v1089, %v1134
        %v1149 = vmul.f32 %v1091, %v1134
        %v1150 = vmul.f32 %v1093, %v1135
        %v1151 = vmul.f32 %v1095, %v1135
        %s1152 = scalar_lea.vmem %s357, 2
        %v1153 = vld [vmem:[%s1152] sm:$0x3]
        %v1155 = vperm.slane %v1153, 0
        %v1156 = vperm.slane %v1153, 1
        %v1158 = vsel %vm583, %v1156, 0
        %v1161 = vsel %vm583, %v1137, 0
        %v1164 = vsel %vm583, %v1139, 0
        %v1167 = vsel %vm583, %v1141, 0
        %v1170 = vsel %vm583, %v1143, 0
        %v1173 = vsel %vm583, %v1145, 0
        %v1176 = vsel %vm583, %v1147, 0
        %v1179 = vsel %vm583, %v1149, 0
        %v1182 = vsel %vm583, %v1151, 0
        %1184 = vmatpush.xpose.msra.mxu0 0.0
        %1185 = vmatpush.xpose.msra.mxu0 0.0
        %1186 = vmatpush.xpose.msra.mxu0 0.0
        %1187 = vmatpush.xpose.msra.mxu0 0.0
        %1188 = vmatpush.xpose.msra.mxu0 0.0
        %1189 = vmatpush.xpose.msra.mxu0 0.0
        %1190 = vmatpush.xpose.msra.mxu0 0.0
        %1191 = vmatpush.xpose.msra.mxu0 0.0
        %1192 = vmatpush.xpose.msra.mxu0 %v1150
        %1193 = vmatpush.xpose.msra.mxu0 %v1148
        %1194 = vmatpush.xpose.msra.mxu0 %v1146
        %1195 = vmatpush.xpose.msra.mxu0 %v1144
        %1196 = vmatpush.xpose.msra.mxu0 %v1142
        %1197 = vmatpush.xpose.msra.mxu0 %v1140
        %1198 = vmatpush.xpose.msra.mxu0 %v1138
        %1199 = vmatpush.xpose.msra.mxu0 %v1136
        %1200 = vmatmul.f32.gmra.mxu0 %v1155
        %v1201 = vpop.f32.mrf.mxu0
        %v1202 = vadd.f32 0.0, %v1201
        %1203 = vdwg.mxu0
        %1204 = vmatpush.xpose.msra.mxu0 0.0
        %1205 = vmatpush.xpose.msra.mxu0 0.0
        %1206 = vmatpush.xpose.msra.mxu0 0.0
        %1207 = vmatpush.xpose.msra.mxu0 0.0
        %1208 = vmatpush.xpose.msra.mxu0 0.0
        %1209 = vmatpush.xpose.msra.mxu0 0.0
        %1210 = vmatpush.xpose.msra.mxu0 0.0
        %1211 = vmatpush.xpose.msra.mxu0 0.0
        %1212 = vmatpush.xpose.msra.mxu0 %v1182
        %1213 = vmatpush.xpose.msra.mxu0 %v1179
        %1214 = vmatpush.xpose.msra.mxu0 %v1176
        %1215 = vmatpush.xpose.msra.mxu0 %v1173
        %1216 = vmatpush.xpose.msra.mxu0 %v1170
        %1217 = vmatpush.xpose.msra.mxu0 %v1167
        %1218 = vmatpush.xpose.msra.mxu0 %v1164
        %1219 = vmatpush.xpose.msra.mxu0 %v1161
        %1220 = vmatmul.f32.gmra.mxu0 %v1158
        %v1221 = vpop.f32.mrf.mxu0
        %v1222 = vadd.f32 %v1202, %v1221
        %1223 = vdwg.mxu0
        %1225 = vrot.lane.b32.xlu0 %v1222, 64
        %v1226 = vpop.permute.xlu0 %1225
        %vm1228 = vcmp.ge.s32.totalorder %v791, 64
        %vm1229 = vcmp.lt.s32.totalorder %v791, 128
        %vm1230 = vmand %vm1228, %vm1229
        %1231 = vst.msk [vmem:[#allocation2] sm:$0x1] %vm1230, %v1226
        %s1232 = scalar_lea.vmem %s348, 64
        %v1233 = vld [vmem:[%s1232] sm:$0xf]
        %v1234 = vld [vmem:[%s1232 + $0x4] sm:$0xf]
        %v1235 = vld [vmem:[%s1232 + $0x8] sm:$0xf]
        %v1236 = vld [vmem:[%s1232 + $0xc] sm:$0xf]
        %v1237 = vld [vmem:[%s1232 + $0x10] sm:$0xf]
        %v1238 = vld [vmem:[%s1232 + $0x14] sm:$0xf]
        %v1239 = vld [vmem:[%s1232 + $0x18] sm:$0xf]
        %v1240 = vld [vmem:[%s1232 + $0x1c] sm:$0xf]
        %s1241 = scalar_lea.vmem %s353, 192
        %v1242 = vld [vmem:[%s1241] sm:$0xf]
        %v1243 = vld [vmem:[%s1241 + $0x4] sm:$0xf]
        %v1244 = vld [vmem:[%s1241 + $0x8] sm:$0xf]
        %v1245 = vld [vmem:[%s1241 + $0xc] sm:$0xf]
        %v1246 = vld [vmem:[%s1241 + $0x10] sm:$0xf]
        %v1247 = vld [vmem:[%s1241 + $0x14] sm:$0xf]
        %v1248 = vld [vmem:[%s1241 + $0x18] sm:$0xf]
        %v1249 = vld [vmem:[%s1241 + $0x1c] sm:$0xf]
        %v1250 = vld [vmem:[%s1241 + $0x20] sm:$0xf]
        %v1251 = vld [vmem:[%s1241 + $0x24] sm:$0xf]
        %v1252 = vld [vmem:[%s1241 + $0x28] sm:$0xf]
        %v1253 = vld [vmem:[%s1241 + $0x2c] sm:$0xf]
        %v1254 = vld [vmem:[%s1241 + $0x30] sm:$0xf]
        %v1255 = vld [vmem:[%s1241 + $0x34] sm:$0xf]
        %v1256 = vld [vmem:[%s1241 + $0x38] sm:$0xf]
        %v1257 = vld [vmem:[%s1241 + $0x3c] sm:$0xf]
        %v1258 = vld [vmem:[%s1241 + $0x40] sm:$0xf]
        %v1259 = vld [vmem:[%s1241 + $0x44] sm:$0xf]
        %v1260 = vld [vmem:[%s1241 + $0x48] sm:$0xf]
        %v1261 = vld [vmem:[%s1241 + $0x4c] sm:$0xf]
        %v1262 = vld [vmem:[%s1241 + $0x50] sm:$0xf]
        %v1263 = vld [vmem:[%s1241 + $0x54] sm:$0xf]
        %v1264 = vld [vmem:[%s1241 + $0x58] sm:$0xf]
        %v1265 = vld [vmem:[%s1241 + $0x5c] sm:$0xf]
        %v1274 = vunpack.c.l.b16 %v1233
        %v1275 = vunpack.c.l.b16 %v1234
        %v1276 = vunpack.c.l.b16 %v1235
        %v1277 = vunpack.c.l.b16 %v1236
        %v1278 = vunpack.c.l.b16 %v1237
        %v1279 = vunpack.c.l.b16 %v1238
        %v1280 = vunpack.c.l.b16 %v1239
        %v1281 = vunpack.c.l.b16 %v1240
        %v1282 = vpack.c.b16 %v1275, %v1274
        %v1283 = vpack.c.b16 %v1277, %v1276
        %v1284 = vpack.c.b16 %v1279, %v1278
        %v1285 = vpack.c.b16 %v1281, %v1280
        %v1310 = vunpack.c.l.b16 %v1242
        %v1311 = vunpack.c.l.b16 %v1243
        %v1312 = vunpack.c.l.b16 %v1244
        %v1313 = vunpack.c.l.b16 %v1245
        %v1314 = vunpack.c.l.b16 %v1246
        %v1315 = vunpack.c.l.b16 %v1247
        %v1316 = vunpack.c.l.b16 %v1248
        %v1317 = vunpack.c.l.b16 %v1249
        %v1318 = vunpack.c.l.b16 %v1250
        %v1319 = vunpack.c.l.b16 %v1251
        %v1320 = vunpack.c.l.b16 %v1252
        %v1321 = vunpack.c.l.b16 %v1253
        %v1322 = vunpack.c.l.b16 %v1254
        %v1323 = vunpack.c.l.b16 %v1255
        %v1324 = vunpack.c.l.b16 %v1256
        %v1325 = vunpack.c.l.b16 %v1257
        %v1326 = vunpack.c.l.b16 %v1258
        %v1327 = vunpack.c.l.b16 %v1259
        %v1328 = vunpack.c.l.b16 %v1260
        %v1329 = vunpack.c.l.b16 %v1261
        %v1330 = vunpack.c.l.b16 %v1262
        %v1331 = vunpack.c.l.b16 %v1263
        %v1332 = vunpack.c.l.b16 %v1264
        %v1333 = vunpack.c.l.b16 %v1265
        %v1334 = vpack.c.b16 %v1311, %v1310
        %v1335 = vpack.c.b16 %v1313, %v1312
        %v1336 = vpack.c.b16 %v1315, %v1314
        %v1337 = vpack.c.b16 %v1317, %v1316
        %v1338 = vpack.c.b16 %v1319, %v1318
        %v1339 = vpack.c.b16 %v1321, %v1320
        %v1340 = vpack.c.b16 %v1323, %v1322
        %v1341 = vpack.c.b16 %v1325, %v1324
        %v1342 = vpack.c.b16 %v1327, %v1326
        %v1343 = vpack.c.b16 %v1329, %v1328
        %v1344 = vpack.c.b16 %v1331, %v1330
        %v1345 = vpack.c.b16 %v1333, %v1332
        %v1347 = vsel %vm476, %v1282, 0
        %v1350 = vsel %vm476, %v1283, 0
        %v1353 = vsel %vm476, %v1284, 0
        %v1356 = vsel %vm476, %v1285, 0
        %v1359 = vsel %vm476, %v1334, 0
        %v1362 = vsel %vm476, %v1335, 0
        %v1365 = vsel %vm476, %v1336, 0
        %v1368 = vsel %vm476, %v1337, 0
        %v1371 = vsel %vm476, %v1338, 0
        %v1374 = vsel %vm476, %v1339, 0
        %v1377 = vsel %vm476, %v1340, 0
        %v1380 = vsel %vm476, %v1341, 0
        %v1383 = vsel %vm476, %v1342, 0
        %v1386 = vsel %vm476, %v1343, 0
        %v1389 = vsel %vm476, %v1344, 0
        %v1392 = vsel %vm476, %v1345, 0
        %1394 = vmatpush.bf16.xpose.msra.mxu0 %v1380
        %1395 = vmatpush.bf16.xpose.msra.mxu0 %v1377
        %1396 = vmatpush.bf16.xpose.msra.mxu0 %v1374
        %1397 = vmatpush.bf16.xpose.msra.mxu0 %v1371
        %1398 = vmatpush.bf16.xpose.msra.mxu0 %v1368
        %1399 = vmatpush.bf16.xpose.msra.mxu0 %v1365
        %1400 = vmatpush.bf16.xpose.msra.mxu0 %v1362
        %1401 = vmatpush.bf16.xpose.msra.mxu0 %v1359
        %1402 = vmatmul.bf16.gmra.mxu0 %v1347
        %v1403 = vpop.f32.mrf.mxu0
        %v1404 = vadd.f32 0.0, %v1403
        %v1405 = vpop.f32.mrf.mxu0
        %v1406 = vadd.f32 0.0, %v1405
        %1407 = vmatmul.bf16.gmra.mxu0 %v1350
        %v1408 = vpop.f32.mrf.mxu0
        %v1409 = vadd.f32 0.0, %v1408
        %v1410 = vpop.f32.mrf.mxu0
        %v1411 = vadd.f32 0.0, %v1410
        %1412 = vmatmul.bf16.gmra.mxu0 %v1353
        %v1413 = vpop.f32.mrf.mxu0
        %v1414 = vadd.f32 0.0, %v1413
        %v1415 = vpop.f32.mrf.mxu0
        %v1416 = vadd.f32 0.0, %v1415
        %1417 = vmatmul.bf16.gmra.mxu0 %v1356
        %v1418 = vpop.f32.mrf.mxu0
        %v1419 = vadd.f32 0.0, %v1418
        %v1420 = vpop.f32.mrf.mxu0
        %v1421 = vadd.f32 0.0, %v1420
        %1422 = vdwg.mxu0
        %1423 = vmatpush.bf16.xpose.msra.mxu0 0
        %1424 = vmatpush.bf16.xpose.msra.mxu0 0
        %1425 = vmatpush.bf16.xpose.msra.mxu0 0
        %1426 = vmatpush.bf16.xpose.msra.mxu0 0
        %1427 = vmatpush.bf16.xpose.msra.mxu0 %v1392
        %1428 = vmatpush.bf16.xpose.msra.mxu0 %v1389
        %1429 = vmatpush.bf16.xpose.msra.mxu0 %v1386
        %1430 = vmatpush.bf16.xpose.msra.mxu0 %v1383
        %1431 = vmatmul.bf16.gmra.mxu0 %v1347
        %v1432 = vpop.f32.mrf.mxu0
        %v1433 = vadd.f32 0.0, %v1432
        %v1434 = vpop.f32.mrf.mxu0
        %v1435 = vadd.f32 0.0, %v1434
        %1436 = vmatmul.bf16.gmra.mxu0 %v1350
        %v1437 = vpop.f32.mrf.mxu0
        %v1438 = vadd.f32 0.0, %v1437
        %v1439 = vpop.f32.mrf.mxu0
        %v1440 = vadd.f32 0.0, %v1439
        %1441 = vmatmul.bf16.gmra.mxu0 %v1353
        %v1442 = vpop.f32.mrf.mxu0
        %v1443 = vadd.f32 0.0, %v1442
        %v1444 = vpop.f32.mrf.mxu0
        %v1445 = vadd.f32 0.0, %v1444
        %1446 = vmatmul.bf16.gmra.mxu0 %v1356
        %v1447 = vpop.f32.mrf.mxu0
        %v1448 = vadd.f32 0.0, %v1447
        %v1449 = vpop.f32.mrf.mxu0
        %v1450 = vadd.f32 0.0, %v1449
        %1451 = vdwg.mxu0
        %v1452 = vsel %vm583, %v1433, -inf
        %v1453 = vmax.f32 %v1404, %v1452
        %1454 = vmax.xlane.f32.xlu0 %v1453
        %v1455 = vpop.xlane.xlu0 %1454
        %v1456 = vsel %vm583, %v1435, -inf
        %v1457 = vmax.f32 %v1406, %v1456
        %1458 = vmax.xlane.f32.xlu0 %v1457
        %v1459 = vpop.xlane.xlu0 %1458
        %v1460 = vsel %vm583, %v1438, -inf
        %v1461 = vmax.f32 %v1409, %v1460
        %1462 = vmax.xlane.f32.xlu0 %v1461
        %v1463 = vpop.xlane.xlu0 %1462
        %v1464 = vsel %vm583, %v1440, -inf
        %v1465 = vmax.f32 %v1411, %v1464
        %1466 = vmax.xlane.f32.xlu0 %v1465
        %v1467 = vpop.xlane.xlu0 %1466
        %v1468 = vsel %vm583, %v1443, -inf
        %v1469 = vmax.f32 %v1414, %v1468
        %1470 = vmax.xlane.f32.xlu0 %v1469
        %v1471 = vpop.xlane.xlu0 %1470
        %v1472 = vsel %vm583, %v1445, -inf
        %v1473 = vmax.f32 %v1416, %v1472
        %1474 = vmax.xlane.f32.xlu0 %v1473
        %v1475 = vpop.xlane.xlu0 %1474
        %v1476 = vsel %vm583, %v1448, -inf
        %v1477 = vmax.f32 %v1419, %v1476
        %1478 = vmax.xlane.f32.xlu0 %v1477
        %v1479 = vpop.xlane.xlu0 %1478
        %v1480 = vsel %vm583, %v1450, -inf
        %v1481 = vmax.f32 %v1421, %v1480
        %1482 = vmax.xlane.f32.xlu0 %v1481
        %v1483 = vpop.xlane.xlu0 %1482
        %v1484 = vsub.f32 %v1404, %v1455
        %v1485 = vsub.f32 %v1433, %v1455
        %v1486 = vsub.f32 %v1406, %v1459
        %v1487 = vsub.f32 %v1435, %v1459
        %v1488 = vsub.f32 %v1409, %v1463
        %v1489 = vsub.f32 %v1438, %v1463
        %v1490 = vsub.f32 %v1411, %v1467
        %v1491 = vsub.f32 %v1440, %v1467
        %v1492 = vsub.f32 %v1414, %v1471
        %v1493 = vsub.f32 %v1443, %v1471
        %v1494 = vsub.f32 %v1416, %v1475
        %v1495 = vsub.f32 %v1445, %v1475
        %v1496 = vsub.f32 %v1419, %v1479
        %v1497 = vsub.f32 %v1448, %v1479
        %v1498 = vsub.f32 %v1421, %v1483
        %v1499 = vsub.f32 %v1450, %v1483
        %v1500 = vmul.f32 %v1484, 1.442695
        %v1501 = vpow.pop %v1500
        %v1502 = vmul.f32 %v1485, 1.442695
        %v1503 = vpow.pop %v1502
        %v1504 = vmul.f32 %v1486, 1.442695
        %v1505 = vpow.pop %v1504
        %v1506 = vmul.f32 %v1487, 1.442695
        %v1507 = vpow.pop %v1506
        %v1508 = vmul.f32 %v1488, 1.442695
        %v1509 = vpow.pop %v1508
        %v1510 = vmul.f32 %v1489, 1.442695
        %v1511 = vpow.pop %v1510
        %v1512 = vmul.f32 %v1490, 1.442695
        %v1513 = vpow.pop %v1512
        %v1514 = vmul.f32 %v1491, 1.442695
        %v1515 = vpow.pop %v1514
        %v1516 = vmul.f32 %v1492, 1.442695
        %v1517 = vpow.pop %v1516
        %v1518 = vmul.f32 %v1493, 1.442695
        %v1519 = vpow.pop %v1518
        %v1520 = vmul.f32 %v1494, 1.442695
        %v1521 = vpow.pop %v1520
        %v1522 = vmul.f32 %v1495, 1.442695
        %v1523 = vpow.pop %v1522
        %v1524 = vmul.f32 %v1496, 1.442695
        %v1525 = vpow.pop %v1524
        %v1526 = vmul.f32 %v1497, 1.442695
        %v1527 = vpow.pop %v1526
        %v1528 = vmul.f32 %v1498, 1.442695
        %v1529 = vpow.pop %v1528
        %v1530 = vmul.f32 %v1499, 1.442695
        %v1531 = vpow.pop %v1530
        %v1532 = vsel %vm583, %v1503, 0.0
        %v1533 = vadd.f32 %v1501, %v1532
        %1534 = vadd.xlane.f32.xlu0 %v1533
        %v1535 = vpop.xlane.xlu0 %1534
        %v1536 = vsel %vm583, %v1507, 0.0
        %v1537 = vadd.f32 %v1505, %v1536
        %1538 = vadd.xlane.f32.xlu0 %v1537
        %v1539 = vpop.xlane.xlu0 %1538
        %v1540 = vsel %vm583, %v1511, 0.0
        %v1541 = vadd.f32 %v1509, %v1540
        %1542 = vadd.xlane.f32.xlu0 %v1541
        %v1543 = vpop.xlane.xlu0 %1542
        %v1544 = vsel %vm583, %v1515, 0.0
        %v1545 = vadd.f32 %v1513, %v1544
        %1546 = vadd.xlane.f32.xlu0 %v1545
        %v1547 = vpop.xlane.xlu0 %1546
        %v1548 = vsel %vm583, %v1519, 0.0
        %v1549 = vadd.f32 %v1517, %v1548
        %1550 = vadd.xlane.f32.xlu0 %v1549
        %v1551 = vpop.xlane.xlu0 %1550
        %v1552 = vsel %vm583, %v1523, 0.0
        %v1553 = vadd.f32 %v1521, %v1552
        %1554 = vadd.xlane.f32.xlu0 %v1553
        %v1555 = vpop.xlane.xlu0 %1554
        %v1556 = vsel %vm583, %v1527, 0.0
        %v1557 = vadd.f32 %v1525, %v1556
        %1558 = vadd.xlane.f32.xlu0 %v1557
        %v1559 = vpop.xlane.xlu0 %1558
        %v1560 = vsel %vm583, %v1531, 0.0
        %v1561 = vadd.f32 %v1529, %v1560
        %1562 = vadd.xlane.f32.xlu0 %v1561
        %v1563 = vpop.xlane.xlu0 %1562
        %v1564 = vrcp.pop %v1535
        %v1565 = vrcp.pop %v1539
        %v1566 = vrcp.pop %v1543
        %v1567 = vrcp.pop %v1547
        %v1568 = vrcp.pop %v1551
        %v1569 = vrcp.pop %v1555
        %v1570 = vrcp.pop %v1559
        %v1571 = vrcp.pop %v1563
        %v1572 = vmul.f32 %v1501, %v1564
        %v1573 = vmul.f32 %v1503, %v1564
        %v1574 = vmul.f32 %v1505, %v1565
        %v1575 = vmul.f32 %v1507, %v1565
        %v1576 = vmul.f32 %v1509, %v1566
        %v1577 = vmul.f32 %v1511, %v1566
        %v1578 = vmul.f32 %v1513, %v1567
        %v1579 = vmul.f32 %v1515, %v1567
        %v1580 = vmul.f32 %v1517, %v1568
        %v1581 = vmul.f32 %v1519, %v1568
        %v1582 = vmul.f32 %v1521, %v1569
        %v1583 = vmul.f32 %v1523, %v1569
        %v1584 = vmul.f32 %v1525, %v1570
        %v1585 = vmul.f32 %v1527, %v1570
        %v1586 = vmul.f32 %v1529, %v1571
        %v1587 = vmul.f32 %v1531, %v1571
        %s1588 = scalar_lea.vmem %s357, 4
        %v1589 = vld [vmem:[%s1588] sm:$0x3]
        %v1591 = vperm.slane %v1589, 0
        %v1592 = vperm.slane %v1589, 1
        %v1594 = vsel %vm583, %v1592, 0
        %v1597 = vsel %vm583, %v1573, 0
        %v1600 = vsel %vm583, %v1575, 0
        %v1603 = vsel %vm583, %v1577, 0
        %v1606 = vsel %vm583, %v1579, 0
        %v1609 = vsel %vm583, %v1581, 0
        %v1612 = vsel %vm583, %v1583, 0
        %v1615 = vsel %vm583, %v1585, 0
        %v1618 = vsel %vm583, %v1587, 0
        %1620 = vmatpush.xpose.msra.mxu0 0.0
        %1621 = vmatpush.xpose.msra.mxu0 0.0
        %1622 = vmatpush.xpose.msra.mxu0 0.0
        %1623 = vmatpush.xpose.msra.mxu0 0.0
        %1624 = vmatpush.xpose.msra.mxu0 0.0
        %1625 = vmatpush.xpose.msra.mxu0 0.0
        %1626 = vmatpush.xpose.msra.mxu0 0.0
        %1627 = vmatpush.xpose.msra.mxu0 0.0
        %1628 = vmatpush.xpose.msra.mxu0 %v1586
        %1629 = vmatpush.xpose.msra.mxu0 %v1584
        %1630 = vmatpush.xpose.msra.mxu0 %v1582
        %1631 = vmatpush.xpose.msra.mxu0 %v1580
        %1632 = vmatpush.xpose.msra.mxu0 %v1578
        %1633 = vmatpush.xpose.msra.mxu0 %v1576
        %1634 = vmatpush.xpose.msra.mxu0 %v1574
        %1635 = vmatpush.xpose.msra.mxu0 %v1572
        %1636 = vmatmul.f32.gmra.mxu0 %v1591
        %v1637 = vpop.f32.mrf.mxu0
        %v1638 = vadd.f32 0.0, %v1637
        %1639 = vdwg.mxu0
        %1640 = vmatpush.xpose.msra.mxu0 0.0
        %1641 = vmatpush.xpose.msra.mxu0 0.0
        %1642 = vmatpush.xpose.msra.mxu0 0.0
        %1643 = vmatpush.xpose.msra.mxu0 0.0
        %1644 = vmatpush.xpose.msra.mxu0 0.0
        %1645 = vmatpush.xpose.msra.mxu0 0.0
        %1646 = vmatpush.xpose.msra.mxu0 0.0
        %1647 = vmatpush.xpose.msra.mxu0 0.0
        %1648 = vmatpush.xpose.msra.mxu0 %v1618
        %1649 = vmatpush.xpose.msra.mxu0 %v1615
        %1650 = vmatpush.xpose.msra.mxu0 %v1612
        %1651 = vmatpush.xpose.msra.mxu0 %v1609
        %1652 = vmatpush.xpose.msra.mxu0 %v1606
        %1653 = vmatpush.xpose.msra.mxu0 %v1603
        %1654 = vmatpush.xpose.msra.mxu0 %v1600
        %1655 = vmatpush.xpose.msra.mxu0 %v1597
        %1656 = vmatmul.f32.gmra.mxu0 %v1594
        %v1657 = vpop.f32.mrf.mxu0
        %v1658 = vadd.f32 %v1638, %v1657
        %1659 = vdwg.mxu0
        %1660 = vst.msk [vmem:[#allocation2 + $0x1] sm:$0x1] %vm794, %v1658
        %s1661 = scalar_lea.vmem %s348, 96
        %v1662 = vld [vmem:[%s1661] sm:$0xf]
        %v1663 = vld [vmem:[%s1661 + $0x4] sm:$0xf]
        %v1664 = vld [vmem:[%s1661 + $0x8] sm:$0xf]
        %v1665 = vld [vmem:[%s1661 + $0xc] sm:$0xf]
        %v1666 = vld [vmem:[%s1661 + $0x10] sm:$0xf]
        %v1667 = vld [vmem:[%s1661 + $0x14] sm:$0xf]
        %v1668 = vld [vmem:[%s1661 + $0x18] sm:$0xf]
        %v1669 = vld [vmem:[%s1661 + $0x1c] sm:$0xf]
        %s1670 = scalar_lea.vmem %s353, 288
        %v1671 = vld [vmem:[%s1670] sm:$0xf]
        %v1672 = vld [vmem:[%s1670 + $0x4] sm:$0xf]
        %v1673 = vld [vmem:[%s1670 + $0x8] sm:$0xf]
        %v1674 = vld [vmem:[%s1670 + $0xc] sm:$0xf]
        %v1675 = vld [vmem:[%s1670 + $0x10] sm:$0xf]
        %v1676 = vld [vmem:[%s1670 + $0x14] sm:$0xf]
        %v1677 = vld [vmem:[%s1670 + $0x18] sm:$0xf]
        %v1678 = vld [vmem:[%s1670 + $0x1c] sm:$0xf]
        %v1679 = vld [vmem:[%s1670 + $0x20] sm:$0xf]
        %v1680 = vld [vmem:[%s1670 + $0x24] sm:$0xf]
        %v1681 = vld [vmem:[%s1670 + $0x28] sm:$0xf]
        %v1682 = vld [vmem:[%s1670 + $0x2c] sm:$0xf]
        %v1683 = vld [vmem:[%s1670 + $0x30] sm:$0xf]
        %v1684 = vld [vmem:[%s1670 + $0x34] sm:$0xf]
        %v1685 = vld [vmem:[%s1670 + $0x38] sm:$0xf]
        %v1686 = vld [vmem:[%s1670 + $0x3c] sm:$0xf]
        %v1687 = vld [vmem:[%s1670 + $0x40] sm:$0xf]
        %v1688 = vld [vmem:[%s1670 + $0x44] sm:$0xf]
        %v1689 = vld [vmem:[%s1670 + $0x48] sm:$0xf]
        %v1690 = vld [vmem:[%s1670 + $0x4c] sm:$0xf]
        %v1691 = vld [vmem:[%s1670 + $0x50] sm:$0xf]
        %v1692 = vld [vmem:[%s1670 + $0x54] sm:$0xf]
        %v1693 = vld [vmem:[%s1670 + $0x58] sm:$0xf]
        %v1694 = vld [vmem:[%s1670 + $0x5c] sm:$0xf]
        %v1703 = vunpack.c.l.b16 %v1662
        %v1704 = vunpack.c.l.b16 %v1663
        %v1705 = vunpack.c.l.b16 %v1664
        %v1706 = vunpack.c.l.b16 %v1665
        %v1707 = vunpack.c.l.b16 %v1666
        %v1708 = vunpack.c.l.b16 %v1667
        %v1709 = vunpack.c.l.b16 %v1668
        %v1710 = vunpack.c.l.b16 %v1669
        %v1711 = vpack.c.b16 %v1704, %v1703
        %v1712 = vpack.c.b16 %v1706, %v1705
        %v1713 = vpack.c.b16 %v1708, %v1707
        %v1714 = vpack.c.b16 %v1710, %v1709
        %v1739 = vunpack.c.l.b16 %v1671
        %v1740 = vunpack.c.l.b16 %v1672
        %v1741 = vunpack.c.l.b16 %v1673
        %v1742 = vunpack.c.l.b16 %v1674
        %v1743 = vunpack.c.l.b16 %v1675
        %v1744 = vunpack.c.l.b16 %v1676
        %v1745 = vunpack.c.l.b16 %v1677
        %v1746 = vunpack.c.l.b16 %v1678
        %v1747 = vunpack.c.l.b16 %v1679
        %v1748 = vunpack.c.l.b16 %v1680
        %v1749 = vunpack.c.l.b16 %v1681
        %v1750 = vunpack.c.l.b16 %v1682
        %v1751 = vunpack.c.l.b16 %v1683
        %v1752 = vunpack.c.l.b16 %v1684
        %v1753 = vunpack.c.l.b16 %v1685
        %v1754 = vunpack.c.l.b16 %v1686
        %v1755 = vunpack.c.l.b16 %v1687
        %v1756 = vunpack.c.l.b16 %v1688
        %v1757 = vunpack.c.l.b16 %v1689
        %v1758 = vunpack.c.l.b16 %v1690
        %v1759 = vunpack.c.l.b16 %v1691
        %v1760 = vunpack.c.l.b16 %v1692
        %v1761 = vunpack.c.l.b16 %v1693
        %v1762 = vunpack.c.l.b16 %v1694
        %v1763 = vpack.c.b16 %v1740, %v1739
        %v1764 = vpack.c.b16 %v1742, %v1741
        %v1765 = vpack.c.b16 %v1744, %v1743
        %v1766 = vpack.c.b16 %v1746, %v1745
        %v1767 = vpack.c.b16 %v1748, %v1747
        %v1768 = vpack.c.b16 %v1750, %v1749
        %v1769 = vpack.c.b16 %v1752, %v1751
        %v1770 = vpack.c.b16 %v1754, %v1753
        %v1771 = vpack.c.b16 %v1756, %v1755
        %v1772 = vpack.c.b16 %v1758, %v1757
        %v1773 = vpack.c.b16 %v1760, %v1759
        %v1774 = vpack.c.b16 %v1762, %v1761
        %v1776 = vsel %vm476, %v1711, 0
        %v1779 = vsel %vm476, %v1712, 0
        %v1782 = vsel %vm476, %v1713, 0
        %v1785 = vsel %vm476, %v1714, 0
        %v1788 = vsel %vm476, %v1763, 0
        %v1791 = vsel %vm476, %v1764, 0
        %v1794 = vsel %vm476, %v1765, 0
        %v1797 = vsel %vm476, %v1766, 0
        %v1800 = vsel %vm476, %v1767, 0
        %v1803 = vsel %vm476, %v1768, 0
        %v1806 = vsel %vm476, %v1769, 0
        %v1809 = vsel %vm476, %v1770, 0
        %v1812 = vsel %vm476, %v1771, 0
        %v1815 = vsel %vm476, %v1772, 0
        %v1818 = vsel %vm476, %v1773, 0
        %v1821 = vsel %vm476, %v1774, 0
        %1823 = vmatpush.bf16.xpose.msra.mxu0 %v1809
        %1824 = vmatpush.bf16.xpose.msra.mxu0 %v1806
        %1825 = vmatpush.bf16.xpose.msra.mxu0 %v1803
        %1826 = vmatpush.bf16.xpose.msra.mxu0 %v1800
        %1827 = vmatpush.bf16.xpose.msra.mxu0 %v1797
        %1828 = vmatpush.bf16.xpose.msra.mxu0 %v1794
        %1829 = vmatpush.bf16.xpose.msra.mxu0 %v1791
        %1830 = vmatpush.bf16.xpose.msra.mxu0 %v1788
        %1831 = vmatmul.bf16.gmra.mxu0 %v1776
        %v1832 = vpop.f32.mrf.mxu0
        %v1833 = vadd.f32 0.0, %v1832
        %v1834 = vpop.f32.mrf.mxu0
        %v1835 = vadd.f32 0.0, %v1834
        %1836 = vmatmul.bf16.gmra.mxu0 %v1779
        %v1837 = vpop.f32.mrf.mxu0
        %v1838 = vadd.f32 0.0, %v1837
        %v1839 = vpop.f32.mrf.mxu0
        %v1840 = vadd.f32 0.0, %v1839
        %1841 = vmatmul.bf16.gmra.mxu0 %v1782
        %v1842 = vpop.f32.mrf.mxu0
        %v1843 = vadd.f32 0.0, %v1842
        %v1844 = vpop.f32.mrf.mxu0
        %v1845 = vadd.f32 0.0, %v1844
        %1846 = vmatmul.bf16.gmra.mxu0 %v1785
        %v1847 = vpop.f32.mrf.mxu0
        %v1848 = vadd.f32 0.0, %v1847
        %v1849 = vpop.f32.mrf.mxu0
        %v1850 = vadd.f32 0.0, %v1849
        %1851 = vdwg.mxu0
        %1852 = vmatpush.bf16.xpose.msra.mxu0 0
        %1853 = vmatpush.bf16.xpose.msra.mxu0 0
        %1854 = vmatpush.bf16.xpose.msra.mxu0 0
        %1855 = vmatpush.bf16.xpose.msra.mxu0 0
        %1856 = vmatpush.bf16.xpose.msra.mxu0 %v1821
        %1857 = vmatpush.bf16.xpose.msra.mxu0 %v1818
        %1858 = vmatpush.bf16.xpose.msra.mxu0 %v1815
        %1859 = vmatpush.bf16.xpose.msra.mxu0 %v1812
        %1860 = vmatmul.bf16.gmra.mxu0 %v1776
        %v1861 = vpop.f32.mrf.mxu0
        %v1862 = vadd.f32 0.0, %v1861
        %v1863 = vpop.f32.mrf.mxu0
        %v1864 = vadd.f32 0.0, %v1863
        %1865 = vmatmul.bf16.gmra.mxu0 %v1779
        %v1866 = vpop.f32.mrf.mxu0
        %v1867 = vadd.f32 0.0, %v1866
        %v1868 = vpop.f32.mrf.mxu0
        %v1869 = vadd.f32 0.0, %v1868
        %1870 = vmatmul.bf16.gmra.mxu0 %v1782
        %v1871 = vpop.f32.mrf.mxu0
        %v1872 = vadd.f32 0.0, %v1871
        %v1873 = vpop.f32.mrf.mxu0
        %v1874 = vadd.f32 0.0, %v1873
        %1875 = vmatmul.bf16.gmra.mxu0 %v1785
        %v1876 = vpop.f32.mrf.mxu0
        %v1877 = vadd.f32 0.0, %v1876
        %v1878 = vpop.f32.mrf.mxu0
        %v1879 = vadd.f32 0.0, %v1878
        %1880 = vdwg.mxu0
        %v1881 = vsel %vm583, %v1862, -inf
        %v1882 = vmax.f32 %v1833, %v1881
        %1883 = vmax.xlane.f32.xlu0 %v1882
        %v1884 = vpop.xlane.xlu0 %1883
        %v1885 = vsel %vm583, %v1864, -inf
        %v1886 = vmax.f32 %v1835, %v1885
        %1887 = vmax.xlane.f32.xlu0 %v1886
        %v1888 = vpop.xlane.xlu0 %1887
        %v1889 = vsel %vm583, %v1867, -inf
        %v1890 = vmax.f32 %v1838, %v1889
        %1891 = vmax.xlane.f32.xlu0 %v1890
        %v1892 = vpop.xlane.xlu0 %1891
        %v1893 = vsel %vm583, %v1869, -inf
        %v1894 = vmax.f32 %v1840, %v1893
        %1895 = vmax.xlane.f32.xlu0 %v1894
        %v1896 = vpop.xlane.xlu0 %1895
        %v1897 = vsel %vm583, %v1872, -inf
        %v1898 = vmax.f32 %v1843, %v1897
        %1899 = vmax.xlane.f32.xlu0 %v1898
        %v1900 = vpop.xlane.xlu0 %1899
        %v1901 = vsel %vm583, %v1874, -inf
        %v1902 = vmax.f32 %v1845, %v1901
        %1903 = vmax.xlane.f32.xlu0 %v1902
        %v1904 = vpop.xlane.xlu0 %1903
        %v1905 = vsel %vm583, %v1877, -inf
        %v1906 = vmax.f32 %v1848, %v1905
        %1907 = vmax.xlane.f32.xlu0 %v1906
        %v1908 = vpop.xlane.xlu0 %1907
        %v1909 = vsel %vm583, %v1879, -inf
        %v1910 = vmax.f32 %v1850, %v1909
        %1911 = vmax.xlane.f32.xlu0 %v1910
        %v1912 = vpop.xlane.xlu0 %1911
        %v1913 = vsub.f32 %v1833, %v1884
        %v1914 = vsub.f32 %v1862, %v1884
        %v1915 = vsub.f32 %v1835, %v1888
        %v1916 = vsub.f32 %v1864, %v1888
        %v1917 = vsub.f32 %v1838, %v1892
        %v1918 = vsub.f32 %v1867, %v1892
        %v1919 = vsub.f32 %v1840, %v1896
        %v1920 = vsub.f32 %v1869, %v1896
        %v1921 = vsub.f32 %v1843, %v1900
        %v1922 = vsub.f32 %v1872, %v1900
        %v1923 = vsub.f32 %v1845, %v1904
        %v1924 = vsub.f32 %v1874, %v1904
        %v1925 = vsub.f32 %v1848, %v1908
        %v1926 = vsub.f32 %v1877, %v1908
        %v1927 = vsub.f32 %v1850, %v1912
        %v1928 = vsub.f32 %v1879, %v1912
        %v1929 = vmul.f32 %v1913, 1.442695
        %v1930 = vpow.pop %v1929
        %v1931 = vmul.f32 %v1914, 1.442695
        %v1932 = vpow.pop %v1931
        %v1933 = vmul.f32 %v1915, 1.442695
        %v1934 = vpow.pop %v1933
        %v1935 = vmul.f32 %v1916, 1.442695
        %v1936 = vpow.pop %v1935
        %v1937 = vmul.f32 %v1917, 1.442695
        %v1938 = vpow.pop %v1937
        %v1939 = vmul.f32 %v1918, 1.442695
        %v1940 = vpow.pop %v1939
        %v1941 = vmul.f32 %v1919, 1.442695
        %v1942 = vpow.pop %v1941
        %v1943 = vmul.f32 %v1920, 1.442695
        %v1944 = vpow.pop %v1943
        %v1945 = vmul.f32 %v1921, 1.442695
        %v1946 = vpow.pop %v1945
        %v1947 = vmul.f32 %v1922, 1.442695
        %v1948 = vpow.pop %v1947
        %v1949 = vmul.f32 %v1923, 1.442695
        %v1950 = vpow.pop %v1949
        %v1951 = vmul.f32 %v1924, 1.442695
        %v1952 = vpow.pop %v1951
        %v1953 = vmul.f32 %v1925, 1.442695
        %v1954 = vpow.pop %v1953
        %v1955 = vmul.f32 %v1926, 1.442695
        %v1956 = vpow.pop %v1955
        %v1957 = vmul.f32 %v1927, 1.442695
        %v1958 = vpow.pop %v1957
        %v1959 = vmul.f32 %v1928, 1.442695
        %v1960 = vpow.pop %v1959
        %v1961 = vsel %vm583, %v1932, 0.0
        %v1962 = vadd.f32 %v1930, %v1961
        %1963 = vadd.xlane.f32.xlu0 %v1962
        %v1964 = vpop.xlane.xlu0 %1963
        %v1965 = vsel %vm583, %v1936, 0.0
        %v1966 = vadd.f32 %v1934, %v1965
        %1967 = vadd.xlane.f32.xlu0 %v1966
        %v1968 = vpop.xlane.xlu0 %1967
        %v1969 = vsel %vm583, %v1940, 0.0
        %v1970 = vadd.f32 %v1938, %v1969
        %1971 = vadd.xlane.f32.xlu0 %v1970
        %v1972 = vpop.xlane.xlu0 %1971
        %v1973 = vsel %vm583, %v1944, 0.0
        %v1974 = vadd.f32 %v1942, %v1973
        %1975 = vadd.xlane.f32.xlu0 %v1974
        %v1976 = vpop.xlane.xlu0 %1975
        %v1977 = vsel %vm583, %v1948, 0.0
        %v1978 = vadd.f32 %v1946, %v1977
        %1979 = vadd.xlane.f32.xlu0 %v1978
        %v1980 = vpop.xlane.xlu0 %1979
        %v1981 = vsel %vm583, %v1952, 0.0
        %v1982 = vadd.f32 %v1950, %v1981
        %1983 = vadd.xlane.f32.xlu0 %v1982
        %v1984 = vpop.xlane.xlu0 %1983
        %v1985 = vsel %vm583, %v1956, 0.0
        %v1986 = vadd.f32 %v1954, %v1985
        %1987 = vadd.xlane.f32.xlu0 %v1986
        %v1988 = vpop.xlane.xlu0 %1987
        %v1989 = vsel %vm583, %v1960, 0.0
        %v1990 = vadd.f32 %v1958, %v1989
        %1991 = vadd.xlane.f32.xlu0 %v1990
        %v1992 = vpop.xlane.xlu0 %1991
        %v1993 = vrcp.pop %v1964
        %v1994 = vrcp.pop %v1968
        %v1995 = vrcp.pop %v1972
        %v1996 = vrcp.pop %v1976
        %v1997 = vrcp.pop %v1980
        %v1998 = vrcp.pop %v1984
        %v1999 = vrcp.pop %v1988
        %v2000 = vrcp.pop %v1992
        %v2001 = vmul.f32 %v1930, %v1993
        %v2002 = vmul.f32 %v1932, %v1993
        %v2003 = vmul.f32 %v1934, %v1994
        %v2004 = vmul.f32 %v1936, %v1994
        %v2005 = vmul.f32 %v1938, %v1995
        %v2006 = vmul.f32 %v1940, %v1995
        %v2007 = vmul.f32 %v1942, %v1996
        %v2008 = vmul.f32 %v1944, %v1996
        %v2009 = vmul.f32 %v1946, %v1997
        %v2010 = vmul.f32 %v1948, %v1997
        %v2011 = vmul.f32 %v1950, %v1998
        %v2012 = vmul.f32 %v1952, %v1998
        %v2013 = vmul.f32 %v1954, %v1999
        %v2014 = vmul.f32 %v1956, %v1999
        %v2015 = vmul.f32 %v1958, %v2000
        %v2016 = vmul.f32 %v1960, %v2000
        %s2017 = scalar_lea.vmem %s357, 6
        %v2018 = vld [vmem:[%s2017] sm:$0x3]
        %v2020 = vperm.slane %v2018, 0
        %v2021 = vperm.slane %v2018, 1
        %v2023 = vsel %vm583, %v2021, 0
        %v2026 = vsel %vm583, %v2002, 0
        %v2029 = vsel %vm583, %v2004, 0
        %v2032 = vsel %vm583, %v2006, 0
        %v2035 = vsel %vm583, %v2008, 0
        %v2038 = vsel %vm583, %v2010, 0
        %v2041 = vsel %vm583, %v2012, 0
        %v2044 = vsel %vm583, %v2014, 0
        %v2047 = vsel %vm583, %v2016, 0
        %2049 = vmatpush.xpose.msra.mxu0 0.0
        %2050 = vmatpush.xpose.msra.mxu0 0.0
        %2051 = vmatpush.xpose.msra.mxu0 0.0
        %2052 = vmatpush.xpose.msra.mxu0 0.0
        %2053 = vmatpush.xpose.msra.mxu0 0.0
        %2054 = vmatpush.xpose.msra.mxu0 0.0
        %2055 = vmatpush.xpose.msra.mxu0 0.0
        %2056 = vmatpush.xpose.msra.mxu0 0.0
        %2057 = vmatpush.xpose.msra.mxu0 %v2015
        %2058 = vmatpush.xpose.msra.mxu0 %v2013
        %2059 = vmatpush.xpose.msra.mxu0 %v2011
        %2060 = vmatpush.xpose.msra.mxu0 %v2009
        %2061 = vmatpush.xpose.msra.mxu0 %v2007
        %2062 = vmatpush.xpose.msra.mxu0 %v2005
        %2063 = vmatpush.xpose.msra.mxu0 %v2003
        %2064 = vmatpush.xpose.msra.mxu0 %v2001
        %2065 = vmatmul.f32.gmra.mxu0 %v2020
        %v2066 = vpop.f32.mrf.mxu0
        %v2067 = vadd.f32 0.0, %v2066
        %2068 = vdwg.mxu0
        %2069 = vmatpush.xpose.msra.mxu0 0.0
        %2070 = vmatpush.xpose.msra.mxu0 0.0
        %2071 = vmatpush.xpose.msra.mxu0 0.0
        %2072 = vmatpush.xpose.msra.mxu0 0.0
        %2073 = vmatpush.xpose.msra.mxu0 0.0
        %2074 = vmatpush.xpose.msra.mxu0 0.0
        %2075 = vmatpush.xpose.msra.mxu0 0.0
        %2076 = vmatpush.xpose.msra.mxu0 0.0
        %2077 = vmatpush.xpose.msra.mxu0 %v2047
        %2078 = vmatpush.xpose.msra.mxu0 %v2044
        %2079 = vmatpush.xpose.msra.mxu0 %v2041
        %2080 = vmatpush.xpose.msra.mxu0 %v2038
        %2081 = vmatpush.xpose.msra.mxu0 %v2035
        %2082 = vmatpush.xpose.msra.mxu0 %v2032
        %2083 = vmatpush.xpose.msra.mxu0 %v2029
        %2084 = vmatpush.xpose.msra.mxu0 %v2026
        %2085 = vmatmul.f32.gmra.mxu0 %v2023
        %v2086 = vpop.f32.mrf.mxu0
        %v2087 = vadd.f32 %v2067, %v2086
        %2088 = vdwg.mxu0
        %2090 = vrot.lane.b32.xlu0 %v2087, 64
        %v2091 = vpop.permute.xlu0 %2090
        %2093 = vst.msk [vmem:[#allocation2 + $0x1] sm:$0x1] %vm1230, %v2091
        %v2094 = vld [vmem:[%s4] sm:$0xf]
        %v2095 = vld [vmem:[%s4 + $0x4] sm:$0xf]
        %v2096 = vld [vmem:[%s4 + $0x8] sm:$0xf]
        %v2097 = vld [vmem:[%s4 + $0xc] sm:$0xf]
        %v2098 = vld [vmem:[%s4 + $0x10] sm:$0xf]
        %v2099 = vld [vmem:[%s4 + $0x14] sm:$0xf]
        %v2100 = vld [vmem:[%s4 + $0x18] sm:$0xf]
        %v2101 = vld [vmem:[%s4 + $0x1c] sm:$0xf]
        %v2102 = vld [vmem:[%s362] sm:$0xff]
        %v2103 = vld [vmem:[%s362 + $0x8] sm:$0xff]
        %v2104 = vld [vmem:[%s362 + $0x10] sm:$0xff]
        %v2105 = vld [vmem:[%s362 + $0x18] sm:$0xff]
        %v2106 = vld [vmem:[%s5] sm:$0xff]
        %v2107 = vld [vmem:[%s5 + $0x8] sm:$0xff]
        %v2108 = vld [vmem:[%s5 + $0x10] sm:$0xff]
        %v2109 = vld [vmem:[%s5 + $0x18] sm:$0xff]
        %v2110 = vld [vmem:[%s5 + $0x20] sm:$0xff]
        %v2111 = vld [vmem:[%s5 + $0x28] sm:$0xff]
        %v2112 = vld [vmem:[%s5 + $0x30] sm:$0xff]
        %v2113 = vld [vmem:[%s5 + $0x38] sm:$0xff]
        %2115 = vset.pattern.permute.xlu0 0
        %2116 = vperm.xlu0 %2115, %v2106
        %v2117 = vpop.permute.xlu0 %2116
        %2120 = vset.pattern.permute.xlu0 0
        %2121 = vperm.xlu0 %2120, %v2107
        %v2122 = vpop.permute.xlu0 %2121
        %2125 = vset.pattern.permute.xlu0 0
        %2126 = vperm.xlu0 %2125, %v2108
        %v2127 = vpop.permute.xlu0 %2126
        %2130 = vset.pattern.permute.xlu0 0
        %2131 = vperm.xlu0 %2130, %v2109
        %v2132 = vpop.permute.xlu0 %2131
        %2135 = vset.pattern.permute.xlu0 0
        %2136 = vperm.xlu0 %2135, %v2110
        %v2137 = vpop.permute.xlu0 %2136
        %2140 = vset.pattern.permute.xlu0 0
        %2141 = vperm.xlu0 %2140, %v2111
        %v2142 = vpop.permute.xlu0 %2141
        %2145 = vset.pattern.permute.xlu0 0
        %2146 = vperm.xlu0 %2145, %v2112
        %v2147 = vpop.permute.xlu0 %2146
        %2150 = vset.pattern.permute.xlu0 0
        %2151 = vperm.xlu0 %2150, %v2113
        %v2152 = vpop.permute.xlu0 %2151
        %v2162 = vunpack.c.l.b16 %v2094
        %v2163 = vunpack.c.l.b16 %v2095
        %v2164 = vunpack.c.l.b16 %v2096
        %v2165 = vunpack.c.l.b16 %v2097
        %v2166 = vunpack.c.l.b16 %v2098
        %v2167 = vunpack.c.l.b16 %v2099
        %v2168 = vunpack.c.l.b16 %v2100
        %v2169 = vunpack.c.l.b16 %v2101
        %v2170 = vpack.c.b16 %v2163, %v2162
        %v2171 = vpack.c.b16 %v2165, %v2164
        %v2172 = vpack.c.b16 %v2167, %v2166
        %v2173 = vpack.c.b16 %v2169, %v2168
        %v2178 = vunpack.c.l.b16 %v2102
        %v2179 = vunpack.c.h.b16 %v2102
        %v2180 = vunpack.c.l.b16 %v2103
        %v2181 = vunpack.c.h.b16 %v2103
        %v2182 = vunpack.c.l.b16 %v2104
        %v2183 = vunpack.c.h.b16 %v2104
        %v2184 = vunpack.c.l.b16 %v2105
        %v2185 = vunpack.c.h.b16 %v2105
        %v2186 = vpack.c.b16 %v2180, %v2178
        %v2187 = vpack.c.b16 %v2181, %v2179
        %v2188 = vpack.c.b16 %v2184, %v2182
        %v2189 = vpack.c.b16 %v2185, %v2183
        %v2195 = vsel %vm476, %v2170, 0
        %v2198 = vsel %vm476, %v2171, 0
        %v2201 = vsel %vm476, %v2172, 0
        %v2204 = vsel %vm476, %v2173, 0
        %2206 = vmatpush.bf16.msra.mxu0 0
        %2207 = vmatpush.bf16.msra.mxu0 0
        %2208 = vmatpush.bf16.msra.mxu0 0
        %2209 = vmatpush.bf16.msra.mxu0 0
        %2210 = vmatpush.bf16.msra.mxu0 0
        %2211 = vmatpush.bf16.msra.mxu0 0
        %2212 = vmatpush.bf16.msra.mxu0 %v2188
        %2213 = vmatpush.bf16.msra.mxu0 %v2186
        %2214 = vmatmul.bf16.gmra.mxu0 %v2195
        %v2215 = vpop.f32.mrf.mxu0
        %v2216 = vadd.f32 %v2117, %v2215
        %v2217 = vpop.f32.mrf.mxu0
        %v2218 = vadd.f32 %v2122, %v2217
        %2219 = vmatmul.bf16.gmra.mxu0 %v2198
        %v2220 = vpop.f32.mrf.mxu0
        %v2221 = vadd.f32 %v2127, %v2220
        %v2222 = vpop.f32.mrf.mxu0
        %v2223 = vadd.f32 %v2132, %v2222
        %2224 = vmatmul.bf16.gmra.mxu0 %v2201
        %v2225 = vpop.f32.mrf.mxu0
        %v2226 = vadd.f32 %v2137, %v2225
        %v2227 = vpop.f32.mrf.mxu0
        %v2228 = vadd.f32 %v2142, %v2227
        %2229 = vmatmul.bf16.gmra.mxu0 %v2204
        %v2230 = vpop.f32.mrf.mxu0
        %v2231 = vadd.f32 %v2147, %v2230
        %v2232 = vpop.f32.mrf.mxu0
        %v2233 = vadd.f32 %v2152, %v2232
        %2234 = vdwg.mxu0
        %2235 = vmatpush.bf16.msra.mxu0 0
        %2236 = vmatpush.bf16.msra.mxu0 0
        %2237 = vmatpush.bf16.msra.mxu0 0
        %2238 = vmatpush.bf16.msra.mxu0 0
        %2239 = vmatpush.bf16.msra.mxu0 0
        %2240 = vmatpush.bf16.msra.mxu0 0
        %2241 = vmatpush.bf16.msra.mxu0 %v2189
        %2242 = vmatpush.bf16.msra.mxu0 %v2187
        %2243 = vmatmul.bf16.gmra.mxu0 %v2195
        %v2244 = vpop.f32.mrf.mxu0
        %v2245 = vadd.f32 %v2117, %v2244
        %v2246 = vpop.f32.mrf.mxu0
        %v2247 = vadd.f32 %v2122, %v2246
        %2248 = vmatmul.bf16.gmra.mxu0 %v2198
        %v2249 = vpop.f32.mrf.mxu0
        %v2250 = vadd.f32 %v2127, %v2249
        %v2251 = vpop.f32.mrf.mxu0
        %v2252 = vadd.f32 %v2132, %v2251
        %2253 = vmatmul.bf16.gmra.mxu0 %v2201
        %v2254 = vpop.f32.mrf.mxu0
        %v2255 = vadd.f32 %v2137, %v2254
        %v2256 = vpop.f32.mrf.mxu0
        %v2257 = vadd.f32 %v2142, %v2256
        %2258 = vmatmul.bf16.gmra.mxu0 %v2204
        %v2259 = vpop.f32.mrf.mxu0
        %v2260 = vadd.f32 %v2147, %v2259
        %v2261 = vpop.f32.mrf.mxu0
        %v2262 = vadd.f32 %v2152, %v2261
        %2263 = vdwg.mxu0
        %v2264 = vtanh.pop %v2216
        %v2265 = vtanh.pop %v2245
        %v2266 = vtanh.pop %v2218
        %v2267 = vtanh.pop %v2247
        %v2268 = vtanh.pop %v2221
        %v2269 = vtanh.pop %v2250
        %v2270 = vtanh.pop %v2223
        %v2271 = vtanh.pop %v2252
        %v2272 = vtanh.pop %v2226
        %v2273 = vtanh.pop %v2255
        %v2274 = vtanh.pop %v2228
        %v2275 = vtanh.pop %v2257
        %v2276 = vtanh.pop %v2231
        %v2277 = vtanh.pop %v2260
        %v2278 = vtanh.pop %v2233
        %v2279 = vtanh.pop %v2262
        %v2280 = vld [vmem:[%s6] sm:$0xff]
        %v2281 = vld [vmem:[%s6 + $0x8] sm:$0xff]
        %v2282 = vld [vmem:[%s6 + $0x10] sm:$0xff]
        %v2283 = vld [vmem:[%s6 + $0x18] sm:$0xff]
        %v2284 = vld [vmem:[%s6 + $0x20] sm:$0xff]
        %v2285 = vld [vmem:[%s6 + $0x28] sm:$0xff]
        %v2286 = vld [vmem:[%s6 + $0x30] sm:$0xff]
        %v2287 = vld [vmem:[%s6 + $0x38] sm:$0xff]
        %2289 = vset.pattern.permute.xlu0 0
        %2290 = vperm.xlu0 %2289, %v2280
        %v2291 = vpop.permute.xlu0 %2290
        %2294 = vset.pattern.permute.xlu0 0
        %2295 = vperm.xlu0 %2294, %v2281
        %v2296 = vpop.permute.xlu0 %2295
        %2299 = vset.pattern.permute.xlu0 0
        %2300 = vperm.xlu0 %2299, %v2282
        %v2301 = vpop.permute.xlu0 %2300
        %2304 = vset.pattern.permute.xlu0 0
        %2305 = vperm.xlu0 %2304, %v2283
        %v2306 = vpop.permute.xlu0 %2305
        %2309 = vset.pattern.permute.xlu0 0
        %2310 = vperm.xlu0 %2309, %v2284
        %v2311 = vpop.permute.xlu0 %2310
        %2314 = vset.pattern.permute.xlu0 0
        %2315 = vperm.xlu0 %2314, %v2285
        %v2316 = vpop.permute.xlu0 %2315
        %2319 = vset.pattern.permute.xlu0 0
        %2320 = vperm.xlu0 %2319, %v2286
        %v2321 = vpop.permute.xlu0 %2320
        %2324 = vset.pattern.permute.xlu0 0
        %2325 = vperm.xlu0 %2324, %v2287
        %v2326 = vpop.permute.xlu0 %2325
        %v2328 = vmul.f32 %v2264, %v2291
        %v2329 = vmul.f32 %v2265, %v2291
        %v2330 = vmul.f32 %v2266, %v2296
        %v2331 = vmul.f32 %v2267, %v2296
        %v2332 = vmul.f32 %v2268, %v2301
        %v2333 = vmul.f32 %v2269, %v2301
        %v2334 = vmul.f32 %v2270, %v2306
        %v2335 = vmul.f32 %v2271, %v2306
        %v2336 = vmul.f32 %v2272, %v2311
        %v2337 = vmul.f32 %v2273, %v2311
        %v2338 = vmul.f32 %v2274, %v2316
        %v2339 = vmul.f32 %v2275, %v2316
        %v2340 = vmul.f32 %v2276, %v2321
        %v2341 = vmul.f32 %v2277, %v2321
        %v2342 = vmul.f32 %v2278, %v2326
        %v2343 = vmul.f32 %v2279, %v2326
        %v2344 = vadd.f32 %v2328, %v2330
        %v2345 = vadd.f32 %v2344, %v2332
        %v2346 = vadd.f32 %v2345, %v2334
        %v2347 = vadd.f32 %v2346, %v2336
        %v2348 = vadd.f32 %v2347, %v2338
        %v2349 = vadd.f32 %v2348, %v2340
        %v2350 = vadd.f32 %v2349, %v2342
        %v2351 = vrot.slane %v2350, 4
        %v2352 = vadd.f32 %v2350, %v2351
        %v2353 = vrot.slane %v2352, 2
        %v2354 = vadd.f32 %v2352, %v2353
        %v2355 = vrot.slane %v2354, 1
        %v2356 = vadd.f32 %v2354, %v2355
        %v2357 = vadd.f32 %v2329, %v2331
        %v2358 = vadd.f32 %v2357, %v2333
        %v2359 = vadd.f32 %v2358, %v2335
        %v2360 = vadd.f32 %v2359, %v2337
        %v2361 = vadd.f32 %v2360, %v2339
        %v2362 = vadd.f32 %v2361, %v2341
        %v2363 = vadd.f32 %v2362, %v2343
        %v2364 = vrot.slane %v2363, 4
        %v2365 = vadd.f32 %v2363, %v2364
        %v2366 = vrot.slane %v2365, 2
        %v2367 = vadd.f32 %v2365, %v2366
        %v2368 = vrot.slane %v2367, 1
        %v2369 = vadd.f32 %v2367, %v2368
        %v2370 = vld [vmem:[#allocation3] sm:$0x1]
        %2372 = vset.pattern.permute.xlu0 0
        %2373 = vperm.xlu0 %2372, %v2370
        %v2374 = vpop.permute.xlu0 %2373
        %v2376 = vperm.slane %v2374, 0
        %v2377 = vadd.f32 %v2356, %v2376
        %v2378 = vadd.f32 %v2369, %v2376
        %v2379 = vld [vmem:[#allocation2] sm:$0x3]
        %v2381 = vperm.slane %v2379, 0
        %v2382 = vperm.slane %v2379, 1
        %v2385 = vadd.f32 %v2377, %v2381
        %v2386 = vadd.f32 %v2378, %v2382
        %v2387 = vmul.f32 %v2385, 0.5
        %v2388 = vmul.f32 %v2386, 0.5
        %v2391 = vrot.slane %v2388, 7
        %vm2392 = vcmask 1040384
        %v2393 = vsel %vm2392, %v2387, %v2391
        %vm2395 = vcmp.lt.s32.totalorder %v791, 256
        %vm2396 = vmand %vm792, %vm2395
        %2397 = vst.msk [vmem:[%s343] sm:$0x3] %vm2396, %v2393
        %s2398 = sand.u32 %s220, 1
        %s2399 = scalar_lea.sflag [#allocation5], %s2398
        %s2400 = sand.u32 %s220, 1
        %s2401 = smul.addr %s2400, 2
        %s2402 = scalar_lea.vmem [#allocation4], %s2401
        // Predicated region
        $region53: #{tpu_custom_call.1} parent=51 // pred_check
          %p2403 = pneg %p230
        $region54: #{tpu_custom_call.1} parent=51 // pred_check_branch
          %2405 = sbr.rel (%p2403) target = $region56
        $region55: #{tpu_custom_call.1} parent=51 // pred_region
          %2407 = vsyncadd %s2399, 0
          %s2408 = smul.addr %s24, 2
          %s2409 = scalar_lea.hbm %s8, %s2408
          %s2411 = sshll.u32 %s2402, 4
          %s2412 = int_to_ptr.vmem [resolvable:$true] %s2411
          %s2413 = sshll.u32 %s2409, 4
          %s2414 = int_to_ptr.hbm [resolvable:$true] %s2413
          %2416 = dma.vmem_to_hbm [thread:$0]  %s2412, 32, %s2414, %s2399
        $region56: #{tpu_custom_call.1} parent=51 // pred_fallthru
          _
      $region52: #{tpu_custom_call.1} parent=5 // pred_fallthru
        _
      %p2417 = scmp.le.s32.totalorder 2, %s19
      // Predicated region
      $region57: #{tpu_custom_call.1} parent=5 // pred_check
        %p2418 = pneg %p2417
      $region58: #{tpu_custom_call.1} parent=5 // pred_check_branch
        %2420 = sbr.rel (%p2418) target = $region60
      $region59: #{tpu_custom_call.1} parent=5 // pred_region
        %s2421 = ssub.s32 %s19, 2
        // Predicated region
        $region61: #{tpu_custom_call.1} parent=59 // pred_check
          %p2422 = pneg %p236
        $region62: #{tpu_custom_call.1} parent=59 // pred_check_branch
          %2424 = sbr.rel (%p2422) target = $region64
        $region63: #{tpu_custom_call.1} parent=59 // pred_region
          %s2425 = sand.u32 %s221, 1
          %s2426 = scalar_lea.sflag [#allocation5], %s2425
          %s2427 = sand.u32 %s221, 1
          %s2428 = smul.addr %s2427, 2
          %s2429 = scalar_lea.vmem [#allocation4], %s2428
          %2431 = dma.done %s2426, 32
        $region64: #{tpu_custom_call.1} parent=59 // pred_fallthru
          _
      $region60: #{tpu_custom_call.1} parent=5 // pred_fallthru
        _
    $region6: #{tpu_custom_call.1} parent=1 // loop_footer
      %s23 = sadd.s32 1, %s19
    $region7: #{tpu_custom_call.1} parent=1 // loop_footer_branch
      %18 = sbr.rel target = $region3
    $region8: #{tpu_custom_call.1} parent=1 // loop_exit
      _
    %2432 = vsyncpa [#allocation5], 1
    %s2433 = scalar_lea.sflag [#allocation5], 1
    %2434 = vsyncpa %s2433, 1

</llo_original>
